<compile_context>
chip_gen: v7x
topology: tpu7x:2x2x1
jax: 0.10.0
libtpu: 0.0.40
codegen_flags: <defaults>
</compile_context>

<pallas_src>
import functools
import numpy as np

import jax
import jax.numpy as jnp
from jax.experimental import pallas as pl
from jax.experimental.pallas import tpu as pltpu


# ----------------------------------------------------------------------------
# small helpers
# ----------------------------------------------------------------------------

def _round_up(x, m):
    return x + (-x % m)


def _pick_tm(M):
    """M tile: as large as possible for mem-bound layers, snug for tiny M."""
    if M >= 1024:
        return 512
    if M >= 256:
        return 256
    if M >= 128:
        return 128
    return _round_up(M, 16)


def _pick_kp_tk(K):
    """Pick (Kp, tk) minimizing number of k-steps, then padding waste."""
    best = None
    for tk in (1024, 768, 512, 384, 256, 128):
        Kp = _round_up(K, tk)
        key = (Kp // tk, Kp - K)
        if best is None or key < best[0]:
            best = (key, Kp, tk)
    return best[1], best[2]


def _pick_np(N):
    """Pad N so a large lane-dense tn divides it (fixes the N=640 case)."""
    for tn in (512, 384, 256, 128):
        Np = _round_up(N, tn)
        if Np <= max(1.25 * N, 128):
            return Np
    return _round_up(N, 128)


def _pick_tn(Np, m_blocks):
    """Largest tn (<=512) dividing Np; if the grid would have a single
    parallel block, prefer splitting N into >=2 blocks (tn >= 256) so v7x's
    second TensorCore has work."""
    cands = [t for t in (512, 384, 256, 128) if Np % t == 0]
    tn = cands[0]
    if m_blocks == 1 and Np // tn == 1:
        for t in cands:
            if Np // t >= 2 and t >= 256:
                return t
    return tn


# ----------------------------------------------------------------------------
# Pallas fused GEMM kernel (conv-as-matmul): bf16 operands, f32 accumulator,
# fused per-output-channel shift (+ ReLU) epilogue.
# ----------------------------------------------------------------------------

def _gemm_kernel(a_ref, b_ref, shift_ref, o_ref, acc_ref, *, relu):
    k = pl.program_id(2)

    @pl.when(k == 0)
    def _():
        acc_ref[...] = jnp.zeros_like(acc_ref)

    acc_ref[...] += jnp.dot(a_ref[...], b_ref[...],
                            preferred_element_type=jnp.float32)

    @pl.when(k == pl.num_programs(2) - 1)
    def _():
        y = acc_ref[...] + shift_ref[...]
        if relu:
            y = jnp.maximum(y, 0.0)
        o_ref[...] = y.astype(o_ref.dtype)


@functools.partial(jax.jit,
                   static_argnames=("relu", "tm", "tk", "tn", "n", "out_dtype"))
def _gemm_call(a, b, shift, *, relu, tm, tk, tn, n, out_dtype):
    M, K = a.shape
    Kp, Np = b.shape
    Mp = _round_up(M, tm)
    a_p = a.astype(jnp.bfloat16)
    if Mp != M or Kp != K:
        a_p = jnp.pad(a_p, ((0, Mp - M), (0, Kp - K)))
    grid = (Mp // tm, Np // tn, Kp // tk)
    out = pl.pallas_call(
        functools.partial(_gemm_kernel, relu=relu),
        out_shape=jax.ShapeDtypeStruct((Mp, Np), out_dtype),
        grid_spec=pltpu.PrefetchScalarGridSpec(
            num_scalar_prefetch=0,
            grid=grid,
            in_specs=[
                pl.BlockSpec((tm, tk), lambda i, j, k: (i, k)),
                pl.BlockSpec((tk, tn), lambda i, j, k: (k, j)),
                pl.BlockSpec((1, tn), lambda i, j, k: (0, j)),
            ],
            out_specs=pl.BlockSpec((tm, tn), lambda i, j, k: (i, j)),
            scratch_shapes=[pltpu.VMEM((tm, tn), jnp.float32)],
        ),
        compiler_params=pltpu.CompilerParams(
            dimension_semantics=("parallel", "parallel", "arbitrary"),
            vmem_limit_bytes=32 * 1024 * 1024),
    )(a_p, b, shift)
    if Mp != M or Np != n:
        out = out[:M, :n]
    return out


class GemmParams:
    """BN-scale folded into W; weight pre-padded + pre-cast to bf16 at init."""

    def __init__(self, w_folded, shift):
        K, N = w_folded.shape
        self.K, self.N = K, N
        Kp, tk = _pick_kp_tk(K)
        Np = _pick_np(N)
        self.Kp, self.Np, self.tk = Kp, Np, tk
        self.w = jnp.pad(w_folded.astype(jnp.float32),
                         ((0, Kp - K), (0, Np - N))).astype(jnp.bfloat16)
        self.shift = jnp.pad(shift.reshape(1, N).astype(jnp.float32),
                             ((0, 0), (0, Np - N)))


def gemm(a, p, relu=False, out_dtype=jnp.bfloat16):
    """(M,K) @ (K,N) fused GEMM + shift (+ReLU) on the MXU."""
    M, K = a.shape
    assert K == p.K, (K, p.K)
    tm = _pick_tm(M)
    m_blocks = _round_up(M, tm) // tm
    tn = _pick_tn(p.Np, m_blocks)
    return _gemm_call(a, p.w, p.shift, relu=relu, tm=tm, tk=p.tk, tn=tn,
                      n=p.N, out_dtype=out_dtype)


# ----------------------------------------------------------------------------
# Pallas batched matmul kernel (criss-cross attention), adaptive batch group.
# ----------------------------------------------------------------------------

def _bmm_kernel(a_ref, b_ref, o_ref, *, bb):
    for i in range(bb):                      # static unroll: bb independent dots
        o_ref[i] = jnp.dot(a_ref[i], b_ref[i],
                           preferred_element_type=jnp.float32)


@functools.partial(jax.jit, static_argnames=("bb",))
def _bmm_padded(a, b, *, bb):
    Bt, Mp, Kp = a.shape
    Np = b.shape[2]
    return pl.pallas_call(
        functools.partial(_bmm_kernel, bb=bb),
        out_shape=jax.ShapeDtypeStruct((Bt, Mp, Np), jnp.float32),
        grid=(Bt // bb,),
        in_specs=[pl.BlockSpec((bb, Mp, Kp), lambda i: (i, 0, 0)),
                  pl.BlockSpec((bb, Kp, Np), lambda i: (i, 0, 0))],
        out_specs=pl.BlockSpec((bb, Mp, Np), lambda i: (i, 0, 0)),
        compiler_params=pltpu.CompilerParams(
            dimension_semantics=("parallel",)),      # v7x: shard over 2 TCs
    )(a, b)


def _pick_bb(Bt):
    """Largest group that divides Bt while keeping >=2 parallel grid blocks."""
    for bb in (8, 4, 2, 1):
        if Bt % bb == 0 and Bt // bb >= 2:
            return bb
    return 1


def pallas_bmm(a, b):
    """Batched matmul (Bt,M,K) @ (Bt,K,N) -> (Bt,M,N), bf16 in, f32 out."""
    Bt, M, K = a.shape
    N = b.shape[2]
    bb = _pick_bb(Bt)
    Mp = _round_up(max(M, 16), 16)
    Kp = _round_up(K, 128)
    Np = _round_up(N, 128)
    a_p = a.astype(jnp.bfloat16)
    b_p = b.astype(jnp.bfloat16)
    if (Mp, Kp) != (M, K):
        a_p = jnp.pad(a_p, ((0, 0), (0, Mp - M), (0, Kp - K)))
    if (Kp, Np) != (K, N):
        b_p = jnp.pad(b_p, ((0, 0), (0, Kp - K), (0, Np - N)))
    out = _bmm_padded(a_p, b_p, bb=bb)
    return out[:, :M, :N]


# ----------------------------------------------------------------------------
# Parameter construction (deterministic, synthetic)
# ----------------------------------------------------------------------------

_KEY = [jax.random.PRNGKey(42)]


def _next_key():
    _KEY[0], k = jax.random.split(_KEY[0])
    return k


def _conv_weights(cin, cout, k, bn=True, bias=False):
    """Return (w_folded (cin*k*k, cout), shift (cout,)) with eval-BN folded in."""
    fan_in = cin * k * k
    w = (jax.random.normal(_next_key(), (fan_in, cout), jnp.float32)
         / np.sqrt(fan_in))
    if bn:
        gamma = 1.0 + 0.1 * jax.random.normal(_next_key(), (cout,), jnp.float32)
        beta = 0.1 * jax.random.normal(_next_key(), (cout,), jnp.float32)
        mean = jnp.zeros((cout,), jnp.float32)
        var = jnp.ones((cout,), jnp.float32)
        inv = gamma / jnp.sqrt(var + 1e-5)
        return w * inv[None, :], beta - mean * inv
    if bias:
        return w, 0.1 * jax.random.normal(_next_key(), (cout,), jnp.float32)
    return w, jnp.zeros((cout,), jnp.float32)


# ----------------------------------------------------------------------------
# Conv building blocks
# ----------------------------------------------------------------------------

def extract_patches(x, k, stride, padding, dilation):
    """im2col for NHWC, square kernel k, symmetric padding (bf16-friendly).
    Runs under the outer jit, so pad/concat/cast fuse into one HBM pass."""
    B, H, W, C = x.shape
    if k == 1 and stride == 1 and padding == 0:
        return x, H, W
    xp = jnp.pad(x, ((0, 0), (padding, padding), (padding, padding), (0, 0)))
    eff = dilation * (k - 1) + 1
    Ho = (H + 2 * padding - eff) // stride + 1
    Wo = (W + 2 * padding - eff) // stride + 1
    cols = []
    for iy in range(k):
        for ix in range(k):
            y0 = iy * dilation
            x0 = ix * dilation
            sl = xp[:, y0:y0 + (Ho - 1) * stride + 1:stride,
                    x0:x0 + (Wo - 1) * stride + 1:stride, :]
            cols.append(sl)
    return jnp.concatenate(cols, axis=-1), Ho, Wo


class ConvBN:
    """Conv2d (+ folded eval-mode BatchNorm or bias) + optional ReLU."""

    def __init__(self, cin, cout, k=3, stride=1, padding=None, dilation=1,
                 relu=True, bn=True, bias=False, out_dtype=jnp.bfloat16):
        if padding is None:
            padding = dilation * (k - 1) // 2
        self.k, self.stride, self.padding, self.dilation = k, stride, padding, dilation
        self.relu = relu
        self.out_dtype = out_dtype
        w, shift = _conv_weights(cin, cout, k, bn=bn, bias=bias)
        self.p = GemmParams(w, shift)

    def __call__(self, x):
        patches, Ho, Wo = extract_patches(x, self.k, self.stride,
                                          self.padding, self.dilation)
        B = x.shape[0]
        flat = patches.reshape(B * Ho * Wo, -1)
        out = gemm(flat, self.p, relu=self.relu, out_dtype=self.out_dtype)
        return out.reshape(B, Ho, Wo, -1)


class Merged1x1:
    """Several sibling 1x1 convs sharing the same input merged into one GEMM."""

    def __init__(self, cin, couts, bn=True, bias=False, relu=False,
                 out_dtype=jnp.bfloat16):
        ws, shifts = [], []
        for cout in couts:
            w, s = _conv_weights(cin, cout, 1, bn=bn, bias=bias)
            ws.append(w)
            shifts.append(s)
        self.p = GemmParams(jnp.concatenate(ws, axis=1),
                            jnp.concatenate(shifts, axis=0))
        self.couts = tuple(couts)
        self.relu = relu
        self.out_dtype = out_dtype

    def __call__(self, x):
        B, H, W, C = x.shape
        y = gemm(x.reshape(B * H * W, C), self.p, relu=self.relu,
                 out_dtype=self.out_dtype)
        y = y.reshape(B, H, W, -1)
        outs, off = [], 0
        for c in self.couts:
            outs.append(y[..., off:off + c])
            off += c
        return outs


# ----------------------------------------------------------------------------
# Glue ops
# ----------------------------------------------------------------------------

def resize(x, size):
    """Bilinear (half-pixel) resize, no antialias."""
    B, _, _, C = x.shape
    return jax.image.resize(x, (B, size[0], size[1], C),
                            method="bilinear", antialias=False)


def up2(x):
    return resize(x, (x.shape[1] * 2, x.shape[2] * 2))


# ----------------------------------------------------------------------------
# Sub-modules
# ----------------------------------------------------------------------------

class HarDNetStub:
    # TODO(synk): full HarDNet-68 backbone source not provided; replaced by a
    # 5-stage strided conv stack producing the same feature channels / strides
    # consumed by GCPACCv4Net: 128@/4, 320@/8, 640@/16, 1024@/32.
    def __init__(self):
        self.s0 = ConvBN(3, 64, 3, stride=2, relu=True)
        self.s1 = ConvBN(64, 128, 3, stride=2, relu=True)
        self.s2 = ConvBN(128, 320, 3, stride=2, relu=True)
        self.s3 = ConvBN(320, 640, 3, stride=2, relu=True)
        self.s4 = ConvBN(640, 1024, 3, stride=2, relu=True)

    def __call__(self, x):
        e1 = self.s0(x)
        enc2 = self.s1(e1)
        enc3 = self.s2(enc2)
        enc4 = self.s3(enc3)
        enc5 = self.s4(enc4)
        return enc2, enc3, enc4, enc5


class RFBModified:
    # TODO(synk): the asymmetric (1xk)/(kx1) convs of the original RFB are
    # folded into single dilated 3x3 convs; branch count / dilations preserved.
    def __init__(self, cin, cout):
        self.cout = cout
        # branch0, branch1[0], branch2[0], branch3[0], conv_res share input x:
        # merged into a single 1x1 GEMM with 5*cout output columns.
        self.pre = Merged1x1(cin, (cout,) * 5, bn=True, bias=False, relu=False)
        self.b1 = ConvBN(cout, cout, 3, dilation=3, relu=False)
        self.b2 = ConvBN(cout, cout, 3, dilation=5, relu=False)
        self.b3 = ConvBN(cout, cout, 3, dilation=7, relu=False)
        self.conv_cat = ConvBN(4 * cout, cout, 3, relu=False)

    def __call__(self, x):
        x0, x1in, x2in, x3in, res = self.pre(x)
        x1 = self.b1(x1in)
        x2 = self.b2(x2in)
        x3 = self.b3(x3in)
        xc = self.conv_cat(jnp.concatenate([x0, x1, x2, x3], axis=-1))
        return jax.nn.relu(xc + res)


class Aggregation:
    """PraNet-style partial decoder aggregation -> 1-channel map."""

    def __init__(self, ch):
        self.conv_up1 = ConvBN(ch, ch, 3, relu=False)
        self.conv_up2 = ConvBN(ch, ch, 3, relu=False)
        self.conv_up3 = ConvBN(ch, ch, 3, relu=False)
        self.conv_up4 = ConvBN(ch, ch, 3, relu=False)
        self.conv_up5 = ConvBN(2 * ch, 2 * ch, 3, relu=False)
        self.conv_cat2 = ConvBN(2 * ch, 2 * ch, 3, relu=False)
        self.conv_cat3 = ConvBN(3 * ch, 3 * ch, 3, relu=False)
        self.conv4 = ConvBN(3 * ch, 3 * ch, 3, relu=False)
        self.conv5 = ConvBN(3 * ch, 1, 1, relu=False, bn=False, bias=True,
                            out_dtype=jnp.float32)

    def __call__(self, x1, x2, x3):  # x1 coarsest, x3 finest
        h1, w1 = x1.shape[1], x1.shape[2]
        x1_1 = x1
        x2_1 = self.conv_up1(up2(x1)) * x2
        # single 4x resize instead of up2(up2(.)): one fewer HBM pass
        x3_1 = (self.conv_up2(resize(x1, (4 * h1, 4 * w1)))
                * self.conv_up3(up2(x2)) * x3)
        x2_2 = self.conv_cat2(jnp.concatenate([x2_1, self.conv_up4(up2(x1_1))], -1))
        x3_2 = self.conv_cat3(jnp.concatenate([x3_1, self.conv_up5(up2(x2_2))], -1))
        return self.conv5(self.conv4(x3_2))


class CrissCrossAttention:
    """CCNet criss-cross attention; q/k/v projections merged into one GEMM,
    H-stripe and W-stripe batched matmuls stacked into single Pallas bmm calls."""

    def __init__(self, c):
        self.qkv = Merged1x1(c, (c // 8, c // 8, c), bn=False, bias=True,
                             relu=False)
        # torch inits gamma to 0 -> identity residual at init (matches spec).
        self.gamma = jnp.float32(0.0)

    def __call__(self, x):
        B, H, W, C = x.shape
        q, k, v = self.qkv(x)
        Cq = q.shape[-1]
        # energy along H (columns): e_H[b,h,w,h'] = sum_c q[b,h,w,c] k[b,h',w,c]
        qH = q.transpose(0, 2, 1, 3).reshape(B * W, H, Cq)
        kH = k.transpose(0, 2, 1, 3).reshape(B * W, H, Cq).transpose(0, 2, 1)
        # energy along W (rows): e_W[b,h,w,w'] = sum_c q[b,h,w,c] k[b,h,w',c]
        qW = q.reshape(B * H, W, Cq)
        kW = k.reshape(B * H, W, Cq).transpose(0, 2, 1)
        if H == W:
            e = pallas_bmm(jnp.concatenate([qH, qW], axis=0),
                           jnp.concatenate([kH, kW], axis=0))
            eH = e[:B * W].reshape(B, W, H, H).transpose(0, 2, 1, 3)
            eW = e[B * W:].reshape(B, H, W, W)
        else:
            eH = pallas_bmm(qH, kH).reshape(B, W, H, H).transpose(0, 2, 1, 3)
            eW = pallas_bmm(qW, kW).reshape(B, H, W, W)
        eH = eH + jnp.where(jnp.eye(H, dtype=bool), -jnp.inf, 0.0)[:, None, :]
        att = jax.nn.softmax(jnp.concatenate([eH, eW], axis=3), axis=3)
        attH, attW = att[..., :H], att[..., H:]
        # aggregate values
        aH = attH.transpose(0, 2, 1, 3).reshape(B * W, H, H)
        vH = v.transpose(0, 2, 1, 3).reshape(B * W, H, C)
        aW = attW.reshape(B * H, W, W)
        vW = v.reshape(B * H, W, C)
        if H == W:
            o = pallas_bmm(jnp.concatenate([aH, aW], axis=0),
                           jnp.concatenate([vH, vW], axis=0))
            outH = o[:B * W].reshape(B, W, H, C).transpose(0, 2, 1, 3)
            outW = o[B * W:].reshape(B, H, W, C)
        else:
            outH = pallas_bmm(aH, vH).reshape(B, W, H, C).transpose(0, 2, 1, 3)
            outW = pallas_bmm(aW, vW).reshape(B, H, W, C)
        return self.gamma * (outH + outW) + x


class LocalAttenTriple:
    # TODO(synk): LocalAttenModule source not provided; inferred as a bottleneck
    # conv gate with residual: x * sigmoid(conv3x3(conv1x1(x))) + x.  The three
    # instances in the net share the same input, so their first 1x1 convs are
    # merged into a single GEMM.
    def __init__(self, c, n=3):
        self.n = n
        self.conv1 = Merged1x1(c, (c // 8,) * n, bn=True, bias=False, relu=True)
        self.conv2 = [ConvBN(c // 8, c, 3, relu=False) for _ in range(n)]

    def __call__(self, x):
        gs = self.conv1(x)
        outs = []
        for g, conv2 in zip(gs, self.conv2):
            gate = jax.nn.sigmoid(conv2(g))
            outs.append(x * gate + x)
        return outs


class FAMPra:
    # TODO(synk): FAMPra source not provided; inferred as encoder projection +
    # decoder/context fusion with a PraNet-style reverse-attention crop update.
    def __init__(self, enc_ch, c):
        self.conv_enc = ConvBN(enc_ch, c, 3, relu=True)
        self.conv_fuse = ConvBN(c, c, 3, relu=True)
        self.conv_out = ConvBN(c, 1, 3, relu=False, bn=False, bias=True,
                               out_dtype=jnp.float32)

    def __call__(self, enc, dec_prev, context, crop_prev):
        H, W = enc.shape[1], enc.shape[2]
        dec_up = resize(dec_prev, (H, W))
        ctx_up = resize(context, (H, W))
        dec = self.conv_fuse(self.conv_enc(enc) + dec_up + ctx_up)
        ra = 1.0 - jax.nn.sigmoid(crop_prev)            # reverse attention
        crop = self.conv_out(dec * ra) + crop_prev
        return dec, crop


# ----------------------------------------------------------------------------
# Top-level network (mirrors GCPACCv4Net.forward)
# ----------------------------------------------------------------------------

class GCPACCv4Net:
    def __init__(self, channel=32):
        interplanes = 256
        self.hardnet = HarDNetStub()
        self.rfb2_1 = RFBModified(320, channel)
        self.rfb3_1 = RFBModified(640, channel)
        self.rfb4_1 = RFBModified(1024, channel)
        self.agg1 = Aggregation(channel)
        self.conva = ConvBN(1024, interplanes, 3, relu=True)
        self.long_relation = CrissCrossAttention(interplanes)
        self.local_attention = LocalAttenTriple(interplanes, n=3)
        self.fam45 = FAMPra(640, interplanes)
        self.fam34 = FAMPra(320, interplanes)
        self.fam23 = FAMPra(128, interplanes)
        # Single outer jit: fuses im2col, pads, bf16 casts, transposes, softmax,
        # resizes and epilogue slices; the per-layer pallas_calls stay nested.
        self._forward = jax.jit(self._forward_impl)

    def _forward_impl(self, x_nchw):
        x = jnp.transpose(x_nchw, (0, 2, 3, 1))          # NCHW -> NHWC
        x = x.astype(jnp.bfloat16)                       # cast once at the top
        origin = (x.shape[1], x.shape[2])

        enc2, enc3, enc4, enc5 = self.hardnet(x)

        dec5 = self.conva(enc5)
        context = self.long_relation(dec5)
        context_4, context_3, context_2 = self.local_attention(context)

        enc3_rfb = self.rfb2_1(enc3)
        enc4_rfb = self.rfb3_1(enc4)
        enc5_rfb = self.rfb4_1(enc5)
        ra5_feat = self.agg1(enc5_rfb, enc4_rfb, enc3_rfb)

        lateral_map_5 = resize(ra5_feat, origin)
        crop_5 = resize(ra5_feat, (ra5_feat.shape[1] // 2, ra5_feat.shape[2] // 2))

        dec4, crop_4 = self.fam45(enc4, dec5, context_4, crop_5)
        lateral_map_4 = resize(crop_4, origin)
        crop_4 = resize(crop_4, (crop_4.shape[1] * 2, crop_4.shape[2] * 2))

        dec3, crop_3 = self.fam34(enc3, dec4, context_3, crop_4)
        lateral_map_3 = resize(crop_3, origin)
        crop_3 = resize(crop_3, (crop_3.shape[1] * 2, crop_3.shape[2] * 2))

        dec2, crop_2 = self.fam23(enc2, dec3, context_2, crop_3)
        lateral_map_2 = resize(crop_2, origin)

        to_nchw = lambda t: jnp.transpose(t, (0, 3, 1, 2))
        return (to_nchw(lateral_map_5), to_nchw(lateral_map_4),
                to_nchw(lateral_map_3), to_nchw(lateral_map_2))

    def __call__(self, x_nchw):
        return self._forward(x_nchw)


# ----------------------------------------------------------------------------
# Main
# ----------------------------------------------------------------------------

if __name__ == "__main__":
    net = GCPACCv4Net(channel=32)
    # Small input consistent with a /32 backbone: (B=2, C=3, H=64, W=64).
    x = jax.random.normal(jax.random.PRNGKey(0), (2, 3, 64, 64), jnp.float32)
    outs = net(x)
    outs = jax.block_until_ready(outs)
    assert len(outs) == 4
    for o in outs:
        assert o.shape == (2, 1, 64, 64), o.shape
        assert bool(jnp.all(jnp.isfinite(o)))
    print("KERNEL_OK")
</pallas_src>

<mosaic_0001>
module attributes {stable_mosaic.version = 11 : i64} {
  func.func @_gemm_kernel(%arg0: i32, %arg1: i32, %arg2: i32, %arg3: memref<512x128xbf16, #tpu.memory_space<vmem>>, %arg4: memref<128x128xbf16, #tpu.memory_space<vmem>>, %arg5: memref<1x128xf32, #tpu.memory_space<vmem>>, %arg6: memref<512x128xbf16, #tpu.memory_space<vmem>>, %arg7: memref<512x128xf32, #tpu.memory_space<vmem>>) attributes {dimension_semantics = [#tpu.dimension_semantics<parallel>, #tpu.dimension_semantics<parallel>, #tpu.dimension_semantics<arbitrary>], iteration_bounds = array<i64: 4, 1, 1>, scalar_prefetch = 0 : i64, scratch_operands = 1 : i64, tpu.core_type = #tpu.core_type<tc>, window_params = [{transform_indices = @transform_0, window_bounds = array<i64: 512, 128>}, {transform_indices = @transform_1, window_bounds = array<i64: 128, 128>}, {transform_indices = @transform_2, window_bounds = array<i64: 1, 128>}, {transform_indices = @transform_3, window_bounds = array<i64: 512, 128>}]} {
    %c0_i32 = arith.constant 0 : i32
    %0 = arith.cmpi eq, %arg2, %c0_i32 : i32
    %1 = arith.extui %0 : i1 to i32
    %c0_i32_0 = arith.constant 0 : i32
    %2 = arith.cmpi ne, %1, %c0_i32_0 : i32
    scf.if %2 {
      %cst_10 = arith.constant 0.000000e+00 : f32
      %12 = vector.broadcast %cst_10 : f32 to vector<512x128xf32>
      %c0_11 = arith.constant 0 : index
      %c0_12 = arith.constant 0 : index
      %13 = vector.load %arg7[%c0_11, %c0_12] : memref<512x128xf32, #tpu.memory_space<vmem>>, vector<512x128xf32>
      tpu.vector_store %arg7[%c0_11, %c0_12], %12 {strides = array<i32>} : memref<512x128xf32, #tpu.memory_space<vmem>>, vector<512x128xf32>,
    } else {
    }
    %c0 = arith.constant 0 : index
    %c0_1 = arith.constant 0 : index
    %3 = vector.load %arg7[%c0, %c0_1] : memref<512x128xf32, #tpu.memory_space<vmem>>, vector<512x128xf32>
    %c0_2 = arith.constant 0 : index
    %c0_3 = arith.constant 0 : index
    %4 = vector.load %arg3[%c0_2, %c0_3] : memref<512x128xbf16, #tpu.memory_space<vmem>>, vector<512x128xbf16>
    %c0_4 = arith.constant 0 : index
    %c0_5 = arith.constant 0 : index
    %5 = vector.load %arg4[%c0_4, %c0_5] : memref<128x128xbf16, #tpu.memory_space<vmem>>, vector<128x128xbf16>
    %cst = arith.constant dense<0.000000e+00> : vector<512x128xf32>
    %6 = tpu.matmul %4, %5, %cst {dimension_numbers = #tpu.dot_dimension_numbers<[1], [0], [0], [1], [0, 0, 1, 1], [], []>} : vector<512x128xbf16>, vector<128x128xbf16>, vector<512x128xf32> -> vector<512x128xf32>
    %7 = arith.addf %3, %6 : vector<512x128xf32>
    %c0_6 = arith.constant 0 : index
    %c0_7 = arith.constant 0 : index
    %8 = vector.load %arg7[%c0_6, %c0_7] : memref<512x128xf32, #tpu.memory_space<vmem>>, vector<512x128xf32>
    tpu.vector_store %arg7[%c0_6, %c0_7], %7 {strides = array<i32>} : memref<512x128xf32, #tpu.memory_space<vmem>>, vector<512x128xf32>,
    %c0_i32_8 = arith.constant 0 : i32
    %9 = arith.cmpi eq, %arg2, %c0_i32_8 : i32
    %10 = arith.extui %9 : i1 to i32
    %c0_i32_9 = arith.constant 0 : i32
    %11 = arith.cmpi ne, %10, %c0_i32_9 : i32
    scf.if %11 {
      %c0_10 = arith.constant 0 : index
      %c0_11 = arith.constant 0 : index
      %12 = vector.load %arg7[%c0_10, %c0_11] : memref<512x128xf32, #tpu.memory_space<vmem>>, vector<512x128xf32>
      %c0_12 = arith.constant 0 : index
      %c0_13 = arith.constant 0 : index
      %13 = vector.load %arg5[%c0_12, %c0_13] : memref<1x128xf32, #tpu.memory_space<vmem>>, vector<1x128xf32>
      %14 = vector.broadcast %13 : vector<1x128xf32> to vector<512x128xf32>
      %15 = arith.addf %12, %14 : vector<512x128xf32>
      %cst_14 = arith.constant 0.000000e+00 : f32
      %16 = vector.broadcast %cst_14 : f32 to vector<512x128xf32>
      %17 = arith.maximumf %15, %16 : vector<512x128xf32>
      %18 = arith.truncf %17 : vector<512x128xf32> to vector<512x128xbf16>
      %c0_15 = arith.constant 0 : index
      %c0_16 = arith.constant 0 : index
      %19 = vector.load %arg6[%c0_15, %c0_16] : memref<512x128xbf16, #tpu.memory_space<vmem>>, vector<512x128xbf16>
      tpu.vector_store %arg6[%c0_15, %c0_16], %18 {strides = array<i32>} : memref<512x128xbf16, #tpu.memory_space<vmem>>, vector<512x128xbf16>,
    } else {
    }
    return
  }
  func.func @transform_0(%arg0: i32, %arg1: i32, %arg2: i32) -> (i32, i32) {
    %c0_i32 = arith.constant 0 : i32
    return %arg0, %arg2 : i32, i32
  }
  func.func @transform_1(%arg0: i32, %arg1: i32, %arg2: i32) -> (i32, i32) {
    %c0_i32 = arith.constant 0 : i32
    return %arg2, %arg1 : i32, i32
  }
  func.func @transform_2(%arg0: i32, %arg1: i32, %arg2: i32) -> (i32, i32) {
    %c0_i32 = arith.constant 0 : i32
    %c0_i32_0 = arith.constant 0 : i32
    return %c0_i32, %arg1 : i32, i32
  }
  func.func @transform_3(%arg0: i32, %arg1: i32, %arg2: i32) -> (i32, i32) {
    %c0_i32 = arith.constant 0 : i32
    return %arg0, %arg1 : i32, i32
  }
}

</mosaic_0001>

<llo_original>
// kernel: _gemm_call.1
$region0: #{_gemm_call.1}
  #allocation0 [shape = 'u32[]', space=smem, size = 0x4, offset = 0x4, fixed_abs, tag = 'smem constant byte address 0x4 - core index']
  #allocation1 [shape = 'u32[144,128]{1,0:T(1,128)}', space=vmem, size = 0x12000, scoped, tag = 'internal scratch']
  #allocation2 [shape = 'f32[512,128]{1,0:T(8,128)}', space=vmem, size = 0x40000, scoped, tag = 'scratch operand']
  %s0 = inlined_call_operand.vmem [shape: bf16[2048,128], index: 0, kind: input, shape index: {}]
  %s1 = inlined_call_operand.vmem [shape: bf16[128,128], index: 1, kind: input, shape index: {}]
  %s2 = inlined_call_operand.vmem [shape: f32[1,128], index: 2, kind: input, shape index: {}]
  %s3 = inlined_call_operand.vmem [shape: bf16[2048,128], index: 3, kind: output, shape index: {}]
  %s4 = sld [smem:[#allocation0]]
  $region53: #{_gemm_call.1} parent=0
    _
  %s6 = ssub.s32 1, %s4
  %s7 = scalar_select 0, %s6, %s4
  loop: start=0, step=1, limit=6
  $region2: #{_gemm_call.1} parent=0 // loop_pre_header
    _
  $region3: #{_gemm_call.1} parent=0 // loop_header
    %s9 = sphi 0, %s13
    %p10 = scmp.ge.s32.totalorder %s9, 6
    %s16 = sphi 0, %s35
    %s17 = sphi 0, %s31
    %s18 = sphi 0, %s27
    %s19 = sphi 0, %s16
    %s20 = sphi 0, %s17
    %s21 = sphi 0, %s18
    %s22 = sphi 0, %s19
    %s23 = sphi 0, %s20
    %s24 = sphi 0, %s21
    %s40 = sphi 0, %s42
    %s43 = sphi 0, %s40
    %s44 = sphi 0, %s43
    %s60 = sphi 0, %s44
    %s68 = sphi 0, %s70
    %s71 = sphi 0, %s68
    %s72 = sphi 0, %s71
    %s88 = sphi 0, %s72
    %s94 = sphi 0, %s96
    %s97 = sphi 0, %s94
    %s98 = sphi 0, %s97
    %s114 = sphi 0, %s98
    %s122 = sphi 0, %s124
    %s125 = sphi 0, %s122
    %s126 = sphi 0, %s125
    %s142 = sphi 0, %s126
  $region4: #{_gemm_call.1} parent=0 // loop_header_branch
    %12 = sbr.rel (%p10) target = $region8
  $region5: #{_gemm_call.1} parent=0 // loop_body
    %s14 = ssub.s32 %s9, 1
    %s15 = ssub.s32 %s9, 2
    %s25 = sadd.s32 1, %s18
    %p26 = scmp.ge.s32.totalorder %s25, 1
    %s27 = scalar_select %p26, 0, %s25
    %s28 = sadd.s32 1, %s17
    %s29 = scalar_select %p26, %s28, %s17
    %p30 = scmp.ge.s32.totalorder %s29, 1
    %s31 = scalar_select %p30, 0, %s29
    %s32 = sadd.s32 1, %s16
    %s33 = scalar_select %p30, %s32, %s16
    %p34 = scmp.ge.s32.totalorder %s33, 4
    %s35 = scalar_select %p34, 0, %s33
    %s36 = ssub.s32 %s16, %s35
    %s37 = ssub.s32 %s18, %s27
    %s38 = sor.u32 %s36, %s37
    %p39 = scmp.eq.s32.totalorder %s38, 0
    %s41 = sadd.s32 %s40, 1
    %s42 = scalar_select %p39, %s40, %s41
    %p45 = pneg %p39
    %p46 = scmp.eq.s32.totalorder %s9, 3
    %p47 = por %p45, %p46
    %p48 = scmp.ne.s32.totalorder %s40, %s43
    %p49 = scmp.eq.s32.totalorder %s9, 0
    %p50 = por %p48, %p49
    %p51 = scmp.ne.s32.totalorder %s40, %s43
    %p52 = scmp.eq.s32.totalorder %s14, 3
    %p53 = por %p51, %p52
    %p54 = scmp.ne.s32.totalorder %s43, %s44
    %p55 = scmp.eq.s32.totalorder %s14, 0
    %p56 = por %p54, %p55
    %p57 = scmp.ne.s32.totalorder %s43, %s44
    %p58 = scmp.eq.s32.totalorder %s15, 3
    %p59 = por %p57, %p58
    %p61 = scmp.ne.s32.totalorder %s44, %s60
    %p62 = scmp.eq.s32.totalorder %s15, 0
    %p63 = por %p61, %p62
    %s64 = ssub.s32 %s18, %s27
    %s65 = ssub.s32 %s17, %s31
    %s66 = sor.u32 %s64, %s65
    %p67 = scmp.eq.s32.totalorder %s66, 0
    %s69 = sadd.s32 %s68, 1
    %s70 = scalar_select %p67, %s68, %s69
    %p73 = pneg %p67
    %p74 = scmp.eq.s32.totalorder %s9, 3
    %p75 = por %p73, %p74
    %p76 = scmp.ne.s32.totalorder %s68, %s71
    %p77 = scmp.eq.s32.totalorder %s9, 0
    %p78 = por %p76, %p77
    %p79 = scmp.ne.s32.totalorder %s68, %s71
    %p80 = scmp.eq.s32.totalorder %s14, 3
    %p81 = por %p79, %p80
    %p82 = scmp.ne.s32.totalorder %s71, %s72
    %p83 = scmp.eq.s32.totalorder %s14, 0
    %p84 = por %p82, %p83
    %p85 = scmp.ne.s32.totalorder %s71, %s72
    %p86 = scmp.eq.s32.totalorder %s15, 3
    %p87 = por %p85, %p86
    %p89 = scmp.ne.s32.totalorder %s72, %s88
    %p90 = scmp.eq.s32.totalorder %s15, 0
    %p91 = por %p89, %p90
    %s92 = ssub.s32 %s17, %s31
    %p93 = scmp.eq.s32.totalorder %s92, 0
    %s95 = sadd.s32 %s94, 1
    %s96 = scalar_select %p93, %s94, %s95
    %p99 = pneg %p93
    %p100 = scmp.eq.s32.totalorder %s9, 3
    %p101 = por %p99, %p100
    %p102 = scmp.ne.s32.totalorder %s94, %s97
    %p103 = scmp.eq.s32.totalorder %s9, 0
    %p104 = por %p102, %p103
    %p105 = scmp.ne.s32.totalorder %s94, %s97
    %p106 = scmp.eq.s32.totalorder %s14, 3
    %p107 = por %p105, %p106
    %p108 = scmp.ne.s32.totalorder %s97, %s98
    %p109 = scmp.eq.s32.totalorder %s14, 0
    %p110 = por %p108, %p109
    %p111 = scmp.ne.s32.totalorder %s97, %s98
    %p112 = scmp.eq.s32.totalorder %s15, 3
    %p113 = por %p111, %p112
    %p115 = scmp.ne.s32.totalorder %s98, %s114
    %p116 = scmp.eq.s32.totalorder %s15, 0
    %p117 = por %p115, %p116
    %s118 = ssub.s32 %s16, %s35
    %s119 = ssub.s32 %s17, %s31
    %s120 = sor.u32 %s118, %s119
    %p121 = scmp.eq.s32.totalorder %s120, 0
    %s123 = sadd.s32 %s122, 1
    %s124 = scalar_select %p121, %s122, %s123
    %p127 = pneg %p121
    %p128 = scmp.eq.s32.totalorder %s9, 3
    %p129 = por %p127, %p128
    %p130 = scmp.ne.s32.totalorder %s122, %s125
    %p131 = scmp.eq.s32.totalorder %s9, 0
    %p132 = por %p130, %p131
    %p133 = scmp.ne.s32.totalorder %s122, %s125
    %p134 = scmp.eq.s32.totalorder %s14, 3
    %p135 = por %p133, %p134
    %p136 = scmp.ne.s32.totalorder %s125, %s126
    %p137 = scmp.eq.s32.totalorder %s14, 0
    %p138 = por %p136, %p137
    %p139 = scmp.ne.s32.totalorder %s125, %s126
    %p140 = scmp.eq.s32.totalorder %s15, 3
    %p141 = por %p139, %p140
    %p143 = scmp.ne.s32.totalorder %s126, %s142
    %p144 = scmp.eq.s32.totalorder %s15, 0
    %p145 = por %p143, %p144
    %p146 = scmp.le.s32.totalorder 1, %s9
    %p147 = scmp.lt.s32.totalorder %s9, 5
    %p148 = pnand %p146, %p147
    %p149 = pneg %p148
    // Predicated region
    $region9: #{_gemm_call.1} parent=5 // pred_check
      _
    $region10: #{_gemm_call.1} parent=5 // pred_check_branch
      %151 = sbr.rel (%p148) target = $region12
    $region11: #{_gemm_call.1} parent=5 // pred_region
      %s152 = ssub.s32 %s9, 1
      // Predicated region
      $region13: #{_gemm_call.1} parent=11 // pred_check
        %p153 = pneg %p84
      $region14: #{_gemm_call.1} parent=11 // pred_check_branch
        %155 = sbr.rel (%p153) target = $region16
      $region15: #{_gemm_call.1} parent=11 // pred_region
        %s156 = smul.u32 16, %s21
        %p157 = scmp.lt.s32.totalorder %s156, 15
        %s158 = scalar_select %p157, %s156, 15
        %p159 = scmp.lt.s32.totalorder %s20, 0
        %s160 = scalar_select %p159, %s20, 0
        %s161 = sadd.s32 %s160, %s158
        %s162 = smul.addr %s161, 4
        %s163 = scalar_lea.vmem %s1, %s162
        %s164 = smul.u32 16, %s21
      $region16: #{_gemm_call.1} parent=11 // pred_fallthru
        _
      // Predicated region
      $region17: #{_gemm_call.1} parent=11 // pred_check
        %p165 = pneg %p110
      $region18: #{_gemm_call.1} parent=11 // pred_check_branch
        %167 = sbr.rel (%p165) target = $region20
      $region19: #{_gemm_call.1} parent=11 // pred_region
        %p168 = scmp.lt.s32.totalorder %s20, 0
        %s169 = scalar_select %p168, %s20, 0
        %s170 = scalar_lea.vmem %s2, %s169
      $region20: #{_gemm_call.1} parent=11 // pred_fallthru
        _
    $region12: #{_gemm_call.1} parent=5 // pred_fallthru
      _
    %p171 = scmp.lt.s32.totalorder %s9, 4
    // Predicated region
    $region21: #{_gemm_call.1} parent=5 // pred_check
      %p172 = pneg %p171
    $region22: #{_gemm_call.1} parent=5 // pred_check_branch
      %174 = sbr.rel (%p172) target = $region24
    $region23: #{_gemm_call.1} parent=5 // pred_region
      // Predicated region
      $region25: #{_gemm_call.1} parent=23 // pred_check
        %p175 = pneg %p50
      $region26: #{_gemm_call.1} parent=23 // pred_check_branch
        %177 = sbr.rel (%p175) target = $region28
      $region27: #{_gemm_call.1} parent=23 // pred_region
        %s178 = smul.u32 64, %s16
        %p179 = scmp.lt.s32.totalorder %s178, 255
        %s180 = scalar_select %p179, %s178, 255
        %p181 = scmp.lt.s32.totalorder %s18, 0
        %s182 = scalar_select %p181, %s18, 0
        %s183 = sadd.s32 %s182, %s180
        %s184 = smul.addr %s183, 4
        %s185 = scalar_lea.vmem %s0, %s184
        %s186 = smul.u32 64, %s16
      $region28: #{_gemm_call.1} parent=23 // pred_fallthru
        _
    $region24: #{_gemm_call.1} parent=5 // pred_fallthru
      _
    %p187 = scmp.le.s32.totalorder 1, %s9
    %p188 = scmp.lt.s32.totalorder %s9, 5
    %p189 = pnand %p187, %p188
    %p190 = pneg %p189
    // Predicated region
    $region29: #{_gemm_call.1} parent=5 // pred_check
      _
    $region30: #{_gemm_call.1} parent=5 // pred_check_branch
      %192 = sbr.rel (%p189) target = $region32
    $region31: #{_gemm_call.1} parent=5 // pred_region
      %s193 = ssub.s32 %s9, 1
      %s194 = smul.u32 64, %s19
      %p195 = scmp.lt.s32.totalorder %s194, 255
      %s196 = scalar_select %p195, %s194, 255
      %p197 = scmp.lt.s32.totalorder %s21, 0
      %s198 = scalar_select %p197, %s21, 0
      %s199 = sadd.s32 %s198, %s196
      %s200 = smul.addr %s199, 4
      %s201 = scalar_lea.vmem %s0, %s200
      %p202 = pneg %p56
      %p203 = pneg %p53
      %s204 = smul.u32 16, %s21
      %p205 = scmp.lt.s32.totalorder %s204, 15
      %s206 = scalar_select %p205, %s204, 15
      %p207 = scmp.lt.s32.totalorder %s20, 0
      %s208 = scalar_select %p207, %s20, 0
      %s209 = sadd.s32 %s208, %s206
      %s210 = smul.addr %s209, 4
      %s211 = scalar_lea.vmem %s1, %s210
      %p212 = pneg %p84
      %p213 = pneg %p81
      %p214 = scmp.lt.s32.totalorder %s20, 0
      %s215 = scalar_select %p214, %s20, 0
      %s216 = scalar_lea.vmem %s2, %s215
      %p217 = pneg %p110
      %p218 = pneg %p107
      %p219 = pneg %p138
      %p220 = pneg %p135
      %s221 = smul.u32 64, %s19
      %p222 = scmp.lt.s32.totalorder %s221, 255
      %s223 = scalar_select %p222, %s221, 255
      %p224 = scmp.lt.s32.totalorder %s20, 0
      %s225 = scalar_select %p224, %s20, 0
      %s226 = sadd.s32 %s225, %s223
      %s227 = smul.addr %s226, 4
      %s228 = scalar_lea.vmem %s3, %s227
      %s229 = smul.u32 64, %s19
      %p230 = scmp.lt.s32.totalorder %s229, 255
      %s231 = scalar_select %p230, %s229, 255
      %p232 = scmp.lt.s32.totalorder %s21, 0
      %s233 = scalar_select %p232, %s21, 0
      %s234 = sadd.s32 %s233, %s231
      %s235 = smul.addr %s234, 4
      %s236 = scalar_lea.vmem %s0, %s235
      %s237 = smul.u32 64, %s19
      %s238 = smul.u32 16, %s21
      %p239 = scmp.lt.s32.totalorder %s238, 15
      %s240 = scalar_select %p239, %s238, 15
      %p241 = scmp.lt.s32.totalorder %s20, 0
      %s242 = scalar_select %p241, %s20, 0
      %s243 = sadd.s32 %s242, %s240
      %s244 = smul.addr %s243, 4
      %s245 = scalar_lea.vmem %s1, %s244
      %s246 = smul.u32 16, %s21
      %p247 = scmp.lt.s32.totalorder %s20, 0
      %s248 = scalar_select %p247, %s20, 0
      %s249 = scalar_lea.vmem %s2, %s248
      %s250 = smul.u32 64, %s19
      %p251 = scmp.lt.s32.totalorder %s250, 255
      %s252 = scalar_select %p251, %s250, 255
      %p253 = scmp.lt.s32.totalorder %s20, 0
      %s254 = scalar_select %p253, %s20, 0
      %s255 = sadd.s32 %s254, %s252
      %s256 = smul.addr %s255, 4
      %s257 = scalar_lea.vmem %s3, %s256
      %s258 = smul.u32 64, %s19
      %p260 = scmp.eq.s32.totalorder %s21, 0
      // Predicated region
      $region33: #{_gemm_call.1} parent=31 // pred_check
        %p261 = pneg %p260
      $region34: #{_gemm_call.1} parent=31 // pred_check_branch
        %263 = sbr.rel (%p261) target = $region36
      $region35: #{_gemm_call.1} parent=31 // pred_region
        %264 = vst [vmem:[#allocation2] sm:$0xff] 0.0
        %265 = vst [vmem:[#allocation2 + $0x8] sm:$0xff] 0.0
        %266 = vst [vmem:[#allocation2 + $0x10] sm:$0xff] 0.0
        %267 = vst [vmem:[#allocation2 + $0x18] sm:$0xff] 0.0
        %268 = vst [vmem:[#allocation2 + $0x20] sm:$0xff] 0.0
        %269 = vst [vmem:[#allocation2 + $0x28] sm:$0xff] 0.0
        %270 = vst [vmem:[#allocation2 + $0x30] sm:$0xff] 0.0
        %271 = vst [vmem:[#allocation2 + $0x38] sm:$0xff] 0.0
        %272 = vst [vmem:[#allocation2 + $0x40] sm:$0xff] 0.0
        %273 = vst [vmem:[#allocation2 + $0x48] sm:$0xff] 0.0
        %274 = vst [vmem:[#allocation2 + $0x50] sm:$0xff] 0.0
        %275 = vst [vmem:[#allocation2 + $0x58] sm:$0xff] 0.0
        %276 = vst [vmem:[#allocation2 + $0x60] sm:$0xff] 0.0
        %277 = vst [vmem:[#allocation2 + $0x68] sm:$0xff] 0.0
        %278 = vst [vmem:[#allocation2 + $0x70] sm:$0xff] 0.0
        %279 = vst [vmem:[#allocation2 + $0x78] sm:$0xff] 0.0
        %280 = vst [vmem:[#allocation2 + $0x80] sm:$0xff] 0.0
        %281 = vst [vmem:[#allocation2 + $0x88] sm:$0xff] 0.0
        %282 = vst [vmem:[#allocation2 + $0x90] sm:$0xff] 0.0
        %283 = vst [vmem:[#allocation2 + $0x98] sm:$0xff] 0.0
        %284 = vst [vmem:[#allocation2 + $0xa0] sm:$0xff] 0.0
        %285 = vst [vmem:[#allocation2 + $0xa8] sm:$0xff] 0.0
        %286 = vst [vmem:[#allocation2 + $0xb0] sm:$0xff] 0.0
        %287 = vst [vmem:[#allocation2 + $0xb8] sm:$0xff] 0.0
        %288 = vst [vmem:[#allocation2 + $0xc0] sm:$0xff] 0.0
        %289 = vst [vmem:[#allocation2 + $0xc8] sm:$0xff] 0.0
        %290 = vst [vmem:[#allocation2 + $0xd0] sm:$0xff] 0.0
        %291 = vst [vmem:[#allocation2 + $0xd8] sm:$0xff] 0.0
        %292 = vst [vmem:[#allocation2 + $0xe0] sm:$0xff] 0.0
        %293 = vst [vmem:[#allocation2 + $0xe8] sm:$0xff] 0.0
        %294 = vst [vmem:[#allocation2 + $0xf0] sm:$0xff] 0.0
        %295 = vst [vmem:[#allocation2 + $0xf8] sm:$0xff] 0.0
        %296 = vst [vmem:[#allocation2 + $0x100] sm:$0xff] 0.0
        %297 = vst [vmem:[#allocation2 + $0x108] sm:$0xff] 0.0
        %298 = vst [vmem:[#allocation2 + $0x110] sm:$0xff] 0.0
        %299 = vst [vmem:[#allocation2 + $0x118] sm:$0xff] 0.0
        %300 = vst [vmem:[#allocation2 + $0x120] sm:$0xff] 0.0
        %301 = vst [vmem:[#allocation2 + $0x128] sm:$0xff] 0.0
        %302 = vst [vmem:[#allocation2 + $0x130] sm:$0xff] 0.0
        %303 = vst [vmem:[#allocation2 + $0x138] sm:$0xff] 0.0
        %304 = vst [vmem:[#allocation2 + $0x140] sm:$0xff] 0.0
        %305 = vst [vmem:[#allocation2 + $0x148] sm:$0xff] 0.0
        %306 = vst [vmem:[#allocation2 + $0x150] sm:$0xff] 0.0
        %307 = vst [vmem:[#allocation2 + $0x158] sm:$0xff] 0.0
        %308 = vst [vmem:[#allocation2 + $0x160] sm:$0xff] 0.0
        %309 = vst [vmem:[#allocation2 + $0x168] sm:$0xff] 0.0
        %310 = vst [vmem:[#allocation2 + $0x170] sm:$0xff] 0.0
        %311 = vst [vmem:[#allocation2 + $0x178] sm:$0xff] 0.0
        %312 = vst [vmem:[#allocation2 + $0x180] sm:$0xff] 0.0
        %313 = vst [vmem:[#allocation2 + $0x188] sm:$0xff] 0.0
        %314 = vst [vmem:[#allocation2 + $0x190] sm:$0xff] 0.0
        %315 = vst [vmem:[#allocation2 + $0x198] sm:$0xff] 0.0
        %316 = vst [vmem:[#allocation2 + $0x1a0] sm:$0xff] 0.0
        %317 = vst [vmem:[#allocation2 + $0x1a8] sm:$0xff] 0.0
        %318 = vst [vmem:[#allocation2 + $0x1b0] sm:$0xff] 0.0
        %319 = vst [vmem:[#allocation2 + $0x1b8] sm:$0xff] 0.0
        %320 = vst [vmem:[#allocation2 + $0x1c0] sm:$0xff] 0.0
        %321 = vst [vmem:[#allocation2 + $0x1c8] sm:$0xff] 0.0
        %322 = vst [vmem:[#allocation2 + $0x1d0] sm:$0xff] 0.0
        %323 = vst [vmem:[#allocation2 + $0x1d8] sm:$0xff] 0.0
        %324 = vst [vmem:[#allocation2 + $0x1e0] sm:$0xff] 0.0
        %325 = vst [vmem:[#allocation2 + $0x1e8] sm:$0xff] 0.0
        %326 = vst [vmem:[#allocation2 + $0x1f0] sm:$0xff] 0.0
        %327 = vst [vmem:[#allocation2 + $0x1f8] sm:$0xff] 0.0
      $region36: #{_gemm_call.1} parent=31 // pred_fallthru
        _
      %v328 = vld [vmem:[#allocation2] sm:$0xff]
      %v329 = vld [vmem:[#allocation2 + $0x8] sm:$0xff]
      %v330 = vld [vmem:[#allocation2 + $0x10] sm:$0xff]
      %v331 = vld [vmem:[#allocation2 + $0x18] sm:$0xff]
      %v332 = vld [vmem:[#allocation2 + $0x20] sm:$0xff]
      %v333 = vld [vmem:[#allocation2 + $0x28] sm:$0xff]
      %v334 = vld [vmem:[#allocation2 + $0x30] sm:$0xff]
      %v335 = vld [vmem:[#allocation2 + $0x38] sm:$0xff]
      %v336 = vld [vmem:[#allocation2 + $0x40] sm:$0xff]
      %v337 = vld [vmem:[#allocation2 + $0x48] sm:$0xff]
      %v338 = vld [vmem:[#allocation2 + $0x50] sm:$0xff]
      %v339 = vld [vmem:[#allocation2 + $0x58] sm:$0xff]
      %v340 = vld [vmem:[#allocation2 + $0x60] sm:$0xff]
      %v341 = vld [vmem:[#allocation2 + $0x68] sm:$0xff]
      %v342 = vld [vmem:[#allocation2 + $0x70] sm:$0xff]
      %v343 = vld [vmem:[#allocation2 + $0x78] sm:$0xff]
      %v344 = vld [vmem:[#allocation2 + $0x80] sm:$0xff]
      %v345 = vld [vmem:[#allocation2 + $0x88] sm:$0xff]
      %v346 = vld [vmem:[#allocation2 + $0x90] sm:$0xff]
      %v347 = vld [vmem:[#allocation2 + $0x98] sm:$0xff]
      %v348 = vld [vmem:[#allocation2 + $0xa0] sm:$0xff]
      %v349 = vld [vmem:[#allocation2 + $0xa8] sm:$0xff]
      %v350 = vld [vmem:[#allocation2 + $0xb0] sm:$0xff]
      %v351 = vld [vmem:[#allocation2 + $0xb8] sm:$0xff]
      %v352 = vld [vmem:[#allocation2 + $0xc0] sm:$0xff]
      %v353 = vld [vmem:[#allocation2 + $0xc8] sm:$0xff]
      %v354 = vld [vmem:[#allocation2 + $0xd0] sm:$0xff]
      %v355 = vld [vmem:[#allocation2 + $0xd8] sm:$0xff]
      %v356 = vld [vmem:[#allocation2 + $0xe0] sm:$0xff]
      %v357 = vld [vmem:[#allocation2 + $0xe8] sm:$0xff]
      %v358 = vld [vmem:[#allocation2 + $0xf0] sm:$0xff]
      %v359 = vld [vmem:[#allocation2 + $0xf8] sm:$0xff]
      %v360 = vld [vmem:[#allocation2 + $0x100] sm:$0xff]
      %v361 = vld [vmem:[#allocation2 + $0x108] sm:$0xff]
      %v362 = vld [vmem:[#allocation2 + $0x110] sm:$0xff]
      %v363 = vld [vmem:[#allocation2 + $0x118] sm:$0xff]
      %v364 = vld [vmem:[#allocation2 + $0x120] sm:$0xff]
      %v365 = vld [vmem:[#allocation2 + $0x128] sm:$0xff]
      %v366 = vld [vmem:[#allocation2 + $0x130] sm:$0xff]
      %v367 = vld [vmem:[#allocation2 + $0x138] sm:$0xff]
      %v368 = vld [vmem:[#allocation2 + $0x140] sm:$0xff]
      %v369 = vld [vmem:[#allocation2 + $0x148] sm:$0xff]
      %v370 = vld [vmem:[#allocation2 + $0x150] sm:$0xff]
      %v371 = vld [vmem:[#allocation2 + $0x158] sm:$0xff]
      %v372 = vld [vmem:[#allocation2 + $0x160] sm:$0xff]
      %v373 = vld [vmem:[#allocation2 + $0x168] sm:$0xff]
      %v374 = vld [vmem:[#allocation2 + $0x170] sm:$0xff]
      %v375 = vld [vmem:[#allocation2 + $0x178] sm:$0xff]
      %v376 = vld [vmem:[#allocation2 + $0x180] sm:$0xff]
      %v377 = vld [vmem:[#allocation2 + $0x188] sm:$0xff]
      %v378 = vld [vmem:[#allocation2 + $0x190] sm:$0xff]
      %v379 = vld [vmem:[#allocation2 + $0x198] sm:$0xff]
      %v380 = vld [vmem:[#allocation2 + $0x1a0] sm:$0xff]
      %v381 = vld [vmem:[#allocation2 + $0x1a8] sm:$0xff]
      %v382 = vld [vmem:[#allocation2 + $0x1b0] sm:$0xff]
      %v383 = vld [vmem:[#allocation2 + $0x1b8] sm:$0xff]
      %v384 = vld [vmem:[#allocation2 + $0x1c0] sm:$0xff]
      %v385 = vld [vmem:[#allocation2 + $0x1c8] sm:$0xff]
      %v386 = vld [vmem:[#allocation2 + $0x1d0] sm:$0xff]
      %v387 = vld [vmem:[#allocation2 + $0x1d8] sm:$0xff]
      %v388 = vld [vmem:[#allocation2 + $0x1e0] sm:$0xff]
      %v389 = vld [vmem:[#allocation2 + $0x1e8] sm:$0xff]
      %v390 = vld [vmem:[#allocation2 + $0x1f0] sm:$0xff]
      %v391 = vld [vmem:[#allocation2 + $0x1f8] sm:$0xff]
      %v392 = vld [vmem:[%s236] sm:$0xf]
      %v393 = vld [vmem:[%s236 + $0x4] sm:$0xf]
      %v394 = vld [vmem:[%s236 + $0x8] sm:$0xf]
      %v395 = vld [vmem:[%s236 + $0xc] sm:$0xf]
      %v396 = vld [vmem:[%s236 + $0x10] sm:$0xf]
      %v397 = vld [vmem:[%s236 + $0x14] sm:$0xf]
      %v398 = vld [vmem:[%s236 + $0x18] sm:$0xf]
      %v399 = vld [vmem:[%s236 + $0x1c] sm:$0xf]
      %v400 = vld [vmem:[%s236 + $0x20] sm:$0xf]
      %v401 = vld [vmem:[%s236 + $0x24] sm:$0xf]
      %v402 = vld [vmem:[%s236 + $0x28] sm:$0xf]
      %v403 = vld [vmem:[%s236 + $0x2c] sm:$0xf]
      %v404 = vld [vmem:[%s236 + $0x30] sm:$0xf]
      %v405 = vld [vmem:[%s236 + $0x34] sm:$0xf]
      %v406 = vld [vmem:[%s236 + $0x38] sm:$0xf]
      %v407 = vld [vmem:[%s236 + $0x3c] sm:$0xf]
      %v408 = vld [vmem:[%s236 + $0x40] sm:$0xf]
      %v409 = vld [vmem:[%s236 + $0x44] sm:$0xf]
      %v410 = vld [vmem:[%s236 + $0x48] sm:$0xf]
      %v411 = vld [vmem:[%s236 + $0x4c] sm:$0xf]
      %v412 = vld [vmem:[%s236 + $0x50] sm:$0xf]
      %v413 = vld [vmem:[%s236 + $0x54] sm:$0xf]
      %v414 = vld [vmem:[%s236 + $0x58] sm:$0xf]
      %v415 = vld [vmem:[%s236 + $0x5c] sm:$0xf]
      %v416 = vld [vmem:[%s236 + $0x60] sm:$0xf]
      %v417 = vld [vmem:[%s236 + $0x64] sm:$0xf]
      %v418 = vld [vmem:[%s236 + $0x68] sm:$0xf]
      %v419 = vld [vmem:[%s236 + $0x6c] sm:$0xf]
      %v420 = vld [vmem:[%s236 + $0x70] sm:$0xf]
      %v421 = vld [vmem:[%s236 + $0x74] sm:$0xf]
      %v422 = vld [vmem:[%s236 + $0x78] sm:$0xf]
      %v423 = vld [vmem:[%s236 + $0x7c] sm:$0xf]
      %v424 = vld [vmem:[%s236 + $0x80] sm:$0xf]
      %v425 = vld [vmem:[%s236 + $0x84] sm:$0xf]
      %v426 = vld [vmem:[%s236 + $0x88] sm:$0xf]
      %v427 = vld [vmem:[%s236 + $0x8c] sm:$0xf]
      %v428 = vld [vmem:[%s236 + $0x90] sm:$0xf]
      %v429 = vld [vmem:[%s236 + $0x94] sm:$0xf]
      %v430 = vld [vmem:[%s236 + $0x98] sm:$0xf]
      %v431 = vld [vmem:[%s236 + $0x9c] sm:$0xf]
      %v432 = vld [vmem:[%s236 + $0xa0] sm:$0xf]
      %v433 = vld [vmem:[%s236 + $0xa4] sm:$0xf]
      %v434 = vld [vmem:[%s236 + $0xa8] sm:$0xf]
      %v435 = vld [vmem:[%s236 + $0xac] sm:$0xf]
      %v436 = vld [vmem:[%s236 + $0xb0] sm:$0xf]
      %v437 = vld [vmem:[%s236 + $0xb4] sm:$0xf]
      %v438 = vld [vmem:[%s236 + $0xb8] sm:$0xf]
      %v439 = vld [vmem:[%s236 + $0xbc] sm:$0xf]
      %v440 = vld [vmem:[%s236 + $0xc0] sm:$0xf]
      %v441 = vld [vmem:[%s236 + $0xc4] sm:$0xf]
      %v442 = vld [vmem:[%s236 + $0xc8] sm:$0xf]
      %v443 = vld [vmem:[%s236 + $0xcc] sm:$0xf]
      %v444 = vld [vmem:[%s236 + $0xd0] sm:$0xf]
      %v445 = vld [vmem:[%s236 + $0xd4] sm:$0xf]
      %v446 = vld [vmem:[%s236 + $0xd8] sm:$0xf]
      %v447 = vld [vmem:[%s236 + $0xdc] sm:$0xf]
      %v448 = vld [vmem:[%s236 + $0xe0] sm:$0xf]
      %v449 = vld [vmem:[%s236 + $0xe4] sm:$0xf]
      %v450 = vld [vmem:[%s236 + $0xe8] sm:$0xf]
      %v451 = vld [vmem:[%s236 + $0xec] sm:$0xf]
      %v452 = vld [vmem:[%s236 + $0xf0] sm:$0xf]
      %v453 = vld [vmem:[%s236 + $0xf4] sm:$0xf]
      %v454 = vld [vmem:[%s236 + $0xf8] sm:$0xf]
      %v455 = vld [vmem:[%s236 + $0xfc] sm:$0xf]
      %v456 = vld [vmem:[%s245] sm:$0xf]
      %v457 = vld [vmem:[%s245 + $0x4] sm:$0xf]
      %v458 = vld [vmem:[%s245 + $0x8] sm:$0xf]
      %v459 = vld [vmem:[%s245 + $0xc] sm:$0xf]
      %v460 = vld [vmem:[%s245 + $0x10] sm:$0xf]
      %v461 = vld [vmem:[%s245 + $0x14] sm:$0xf]
      %v462 = vld [vmem:[%s245 + $0x18] sm:$0xf]
      %v463 = vld [vmem:[%s245 + $0x1c] sm:$0xf]
      %v464 = vld [vmem:[%s245 + $0x20] sm:$0xf]
      %v465 = vld [vmem:[%s245 + $0x24] sm:$0xf]
      %v466 = vld [vmem:[%s245 + $0x28] sm:$0xf]
      %v467 = vld [vmem:[%s245 + $0x2c] sm:$0xf]
      %v468 = vld [vmem:[%s245 + $0x30] sm:$0xf]
      %v469 = vld [vmem:[%s245 + $0x34] sm:$0xf]
      %v470 = vld [vmem:[%s245 + $0x38] sm:$0xf]
      %v471 = vld [vmem:[%s245 + $0x3c] sm:$0xf]
      %v536 = vunpack.c.l.b16 %v392
      %v537 = vunpack.c.l.b16 %v393
      %v538 = vunpack.c.l.b16 %v394
      %v539 = vunpack.c.l.b16 %v395
      %v540 = vunpack.c.l.b16 %v396
      %v541 = vunpack.c.l.b16 %v397
      %v542 = vunpack.c.l.b16 %v398
      %v543 = vunpack.c.l.b16 %v399
      %v544 = vunpack.c.l.b16 %v400
      %v545 = vunpack.c.l.b16 %v401
      %v546 = vunpack.c.l.b16 %v402
      %v547 = vunpack.c.l.b16 %v403
      %v548 = vunpack.c.l.b16 %v404
      %v549 = vunpack.c.l.b16 %v405
      %v550 = vunpack.c.l.b16 %v406
      %v551 = vunpack.c.l.b16 %v407
      %v552 = vunpack.c.l.b16 %v408
      %v553 = vunpack.c.l.b16 %v409
      %v554 = vunpack.c.l.b16 %v410
      %v555 = vunpack.c.l.b16 %v411
      %v556 = vunpack.c.l.b16 %v412
      %v557 = vunpack.c.l.b16 %v413
      %v558 = vunpack.c.l.b16 %v414
      %v559 = vunpack.c.l.b16 %v415
      %v560 = vunpack.c.l.b16 %v416
      %v561 = vunpack.c.l.b16 %v417
      %v562 = vunpack.c.l.b16 %v418
      %v563 = vunpack.c.l.b16 %v419
      %v564 = vunpack.c.l.b16 %v420
      %v565 = vunpack.c.l.b16 %v421
      %v566 = vunpack.c.l.b16 %v422
      %v567 = vunpack.c.l.b16 %v423
      %v568 = vunpack.c.l.b16 %v424
      %v569 = vunpack.c.l.b16 %v425
      %v570 = vunpack.c.l.b16 %v426
      %v571 = vunpack.c.l.b16 %v427
      %v572 = vunpack.c.l.b16 %v428
      %v573 = vunpack.c.l.b16 %v429
      %v574 = vunpack.c.l.b16 %v430
      %v575 = vunpack.c.l.b16 %v431
      %v576 = vunpack.c.l.b16 %v432
      %v577 = vunpack.c.l.b16 %v433
      %v578 = vunpack.c.l.b16 %v434
      %v579 = vunpack.c.l.b16 %v435
      %v580 = vunpack.c.l.b16 %v436
      %v581 = vunpack.c.l.b16 %v437
      %v582 = vunpack.c.l.b16 %v438
      %v583 = vunpack.c.l.b16 %v439
      %v584 = vunpack.c.l.b16 %v440
      %v585 = vunpack.c.l.b16 %v441
      %v586 = vunpack.c.l.b16 %v442
      %v587 = vunpack.c.l.b16 %v443
      %v588 = vunpack.c.l.b16 %v444
      %v589 = vunpack.c.l.b16 %v445
      %v590 = vunpack.c.l.b16 %v446
      %v591 = vunpack.c.l.b16 %v447
      %v592 = vunpack.c.l.b16 %v448
      %v593 = vunpack.c.l.b16 %v449
      %v594 = vunpack.c.l.b16 %v450
      %v595 = vunpack.c.l.b16 %v451
      %v596 = vunpack.c.l.b16 %v452
      %v597 = vunpack.c.l.b16 %v453
      %v598 = vunpack.c.l.b16 %v454
      %v599 = vunpack.c.l.b16 %v455
      %v600 = vpack.c.b16 %v537, %v536
      %v601 = vpack.c.b16 %v539, %v538
      %v602 = vpack.c.b16 %v541, %v540
      %v603 = vpack.c.b16 %v543, %v542
      %v604 = vpack.c.b16 %v545, %v544
      %v605 = vpack.c.b16 %v547, %v546
      %v606 = vpack.c.b16 %v549, %v548
      %v607 = vpack.c.b16 %v551, %v550
      %v608 = vpack.c.b16 %v553, %v552
      %v609 = vpack.c.b16 %v555, %v554
      %v610 = vpack.c.b16 %v557, %v556
      %v611 = vpack.c.b16 %v559, %v558
      %v612 = vpack.c.b16 %v561, %v560
      %v613 = vpack.c.b16 %v563, %v562
      %v614 = vpack.c.b16 %v565, %v564
      %v615 = vpack.c.b16 %v567, %v566
      %v616 = vpack.c.b16 %v569, %v568
      %v617 = vpack.c.b16 %v571, %v570
      %v618 = vpack.c.b16 %v573, %v572
      %v619 = vpack.c.b16 %v575, %v574
      %v620 = vpack.c.b16 %v577, %v576
      %v621 = vpack.c.b16 %v579, %v578
      %v622 = vpack.c.b16 %v581, %v580
      %v623 = vpack.c.b16 %v583, %v582
      %v624 = vpack.c.b16 %v585, %v584
      %v625 = vpack.c.b16 %v587, %v586
      %v626 = vpack.c.b16 %v589, %v588
      %v627 = vpack.c.b16 %v591, %v590
      %v628 = vpack.c.b16 %v593, %v592
      %v629 = vpack.c.b16 %v595, %v594
      %v630 = vpack.c.b16 %v597, %v596
      %v631 = vpack.c.b16 %v599, %v598
      %v680 = vunpack.c.l.b16 %v456
      %v681 = vunpack.c.l.b16 %v457
      %v682 = vunpack.c.l.b16 %v458
      %v683 = vunpack.c.l.b16 %v459
      %v684 = vunpack.c.l.b16 %v460
      %v685 = vunpack.c.l.b16 %v461
      %v686 = vunpack.c.l.b16 %v462
      %v687 = vunpack.c.l.b16 %v463
      %v688 = vunpack.c.l.b16 %v464
      %v689 = vunpack.c.l.b16 %v465
      %v690 = vunpack.c.l.b16 %v466
      %v691 = vunpack.c.l.b16 %v467
      %v692 = vunpack.c.l.b16 %v468
      %v693 = vunpack.c.l.b16 %v469
      %v694 = vunpack.c.l.b16 %v470
      %v695 = vunpack.c.l.b16 %v471
      %v696 = vpack.c.b16 %v681, %v680
      %v697 = vpack.c.b16 %v683, %v682
      %v698 = vpack.c.b16 %v685, %v684
      %v699 = vpack.c.b16 %v687, %v686
      %v700 = vpack.c.b16 %v689, %v688
      %v701 = vpack.c.b16 %v691, %v690
      %v702 = vpack.c.b16 %v693, %v692
      %v703 = vpack.c.b16 %v695, %v694
      %712 = vmatprep.subr.bf16.mxu0 0
      %713 = vmatpush1.bf16.msra.mxu0 %v696
      %714 = vmatprep.subr.bf16.mxu0 0
      %715 = vmatpush1.bf16.msra.mxu0 %v697
      %716 = vmatprep.subr.bf16.mxu0 0
      %717 = vmatpush1.bf16.msra.mxu0 %v698
      %718 = vmatprep.subr.bf16.mxu0 0
      %719 = vmatpush1.bf16.msra.mxu0 %v699
      %720 = vmatprep.subr.bf16.mxu0 0
      %721 = vmatpush1.bf16.msra.mxu0 %v700
      %722 = vmatprep.subr.bf16.mxu0 0
      %723 = vmatpush1.bf16.msra.mxu0 %v701
      %724 = vmatprep.subr.bf16.mxu0 0
      %725 = vmatpush1.bf16.msra.mxu0 %v702
      %726 = vmatprep.subr.bf16.mxu0 0
      %727 = vmatpush1.bf16.msra.mxu0 %v703
      %728 = vmatprep.subr.bf16.mxu0 0
      %729 = vmatpush1.bf16.msra.mxu0 0
      %730 = vmatprep.subr.bf16.mxu0 0
      %731 = vmatpush1.bf16.msra.mxu0 0
      %732 = vmatprep.subr.bf16.mxu0 0
      %733 = vmatpush1.bf16.msra.mxu0 0
      %734 = vmatprep.subr.bf16.mxu0 0
      %735 = vmatpush1.bf16.msra.mxu0 0
      %736 = vmatprep.subr.bf16.mxu0 0
      %737 = vmatpush1.bf16.msra.mxu0 0
      %738 = vmatprep.subr.bf16.mxu0 0
      %739 = vmatpush1.bf16.msra.mxu0 0
      %740 = vmatprep.subr.bf16.mxu0 0
      %741 = vmatpush1.bf16.msra.mxu0 0
      %742 = vmatprep.subr.bf16.mxu0 0
      %743 = vmatpush1.bf16.msra.mxu0 0
      %744 = vmatprep.mubr.bf16.mxu0 0
      %745 = vmatmul.mubr.bf16.gmra.mrb[0].mxu0 %v600
      %v746 = vpop.f32.mrb[0].mxu0
      %v747 = vadd.f32 0.0, %v746
      %v748 = vpop.f32.mrb[0].mxu0
      %v749 = vpop.f32.mrb[0].mxu0
      %v750 = vadd.f32 0.0, %v749
      %v751 = vpop.f32.mrb[0].mxu0
      %752 = vmatprep.mubr.bf16.mxu0 0
      %753 = vmatmul.mubr.bf16.gmra.mrb[0].mxu0 %v601
      %v754 = vpop.f32.mrb[0].mxu0
      %v755 = vadd.f32 0.0, %v754
      %v756 = vpop.f32.mrb[0].mxu0
      %v757 = vpop.f32.mrb[0].mxu0
      %v758 = vadd.f32 0.0, %v757
      %v759 = vpop.f32.mrb[0].mxu0
      %760 = vmatprep.mubr.bf16.mxu0 0
      %761 = vmatmul.mubr.bf16.gmra.mrb[0].mxu0 %v602
      %v762 = vpop.f32.mrb[0].mxu0
      %v763 = vadd.f32 0.0, %v762
      %v764 = vpop.f32.mrb[0].mxu0
      %v765 = vpop.f32.mrb[0].mxu0
      %v766 = vadd.f32 0.0, %v765
      %v767 = vpop.f32.mrb[0].mxu0
      %768 = vmatprep.mubr.bf16.mxu0 0
      %769 = vmatmul.mubr.bf16.gmra.mrb[0].mxu0 %v603
      %v770 = vpop.f32.mrb[0].mxu0
      %v771 = vadd.f32 0.0, %v770
      %v772 = vpop.f32.mrb[0].mxu0
      %v773 = vpop.f32.mrb[0].mxu0
      %v774 = vadd.f32 0.0, %v773
      %v775 = vpop.f32.mrb[0].mxu0
      %776 = vmatprep.mubr.bf16.mxu0 0
      %777 = vmatmul.mubr.bf16.gmra.mrb[0].mxu0 %v604
      %v778 = vpop.f32.mrb[0].mxu0
      %v779 = vadd.f32 0.0, %v778
      %v780 = vpop.f32.mrb[0].mxu0
      %v781 = vpop.f32.mrb[0].mxu0
      %v782 = vadd.f32 0.0, %v781
      %v783 = vpop.f32.mrb[0].mxu0
      %784 = vmatprep.mubr.bf16.mxu0 0
      %785 = vmatmul.mubr.bf16.gmra.mrb[0].mxu0 %v605
      %v786 = vpop.f32.mrb[0].mxu0
      %v787 = vadd.f32 0.0, %v786
      %v788 = vpop.f32.mrb[0].mxu0
      %v789 = vpop.f32.mrb[0].mxu0
      %v790 = vadd.f32 0.0, %v789
      %v791 = vpop.f32.mrb[0].mxu0
      %792 = vmatprep.mubr.bf16.mxu0 0
      %793 = vmatmul.mubr.bf16.gmra.mrb[0].mxu0 %v606
      %v794 = vpop.f32.mrb[0].mxu0
      %v795 = vadd.f32 0.0, %v794
      %v796 = vpop.f32.mrb[0].mxu0
      %v797 = vpop.f32.mrb[0].mxu0
      %v798 = vadd.f32 0.0, %v797
      %v799 = vpop.f32.mrb[0].mxu0
      %800 = vmatprep.mubr.bf16.mxu0 0
      %801 = vmatmul.mubr.bf16.gmra.mrb[0].mxu0 %v607
      %v802 = vpop.f32.mrb[0].mxu0
      %v803 = vadd.f32 0.0, %v802
      %v804 = vpop.f32.mrb[0].mxu0
      %v805 = vpop.f32.mrb[0].mxu0
      %v806 = vadd.f32 0.0, %v805
      %v807 = vpop.f32.mrb[0].mxu0
      %808 = vmatprep.mubr.bf16.mxu0 0
      %809 = vmatmul.mubr.bf16.gmra.mrb[0].mxu0 %v608
      %v810 = vpop.f32.mrb[0].mxu0
      %v811 = vadd.f32 0.0, %v810
      %v812 = vpop.f32.mrb[0].mxu0
      %v813 = vpop.f32.mrb[0].mxu0
      %v814 = vadd.f32 0.0, %v813
      %v815 = vpop.f32.mrb[0].mxu0
      %816 = vmatprep.mubr.bf16.mxu0 0
      %817 = vmatmul.mubr.bf16.gmra.mrb[0].mxu0 %v609
      %v818 = vpop.f32.mrb[0].mxu0
      %v819 = vadd.f32 0.0, %v818
      %v820 = vpop.f32.mrb[0].mxu0
      %v821 = vpop.f32.mrb[0].mxu0
      %v822 = vadd.f32 0.0, %v821
      %v823 = vpop.f32.mrb[0].mxu0
      %824 = vmatprep.mubr.bf16.mxu0 0
      %825 = vmatmul.mubr.bf16.gmra.mrb[0].mxu0 %v610
      %v826 = vpop.f32.mrb[0].mxu0
      %v827 = vadd.f32 0.0, %v826
      %v828 = vpop.f32.mrb[0].mxu0
      %v829 = vpop.f32.mrb[0].mxu0
      %v830 = vadd.f32 0.0, %v829
      %v831 = vpop.f32.mrb[0].mxu0
      %832 = vmatprep.mubr.bf16.mxu0 0
      %833 = vmatmul.mubr.bf16.gmra.mrb[0].mxu0 %v611
      %v834 = vpop.f32.mrb[0].mxu0
      %v835 = vadd.f32 0.0, %v834
      %v836 = vpop.f32.mrb[0].mxu0
      %v837 = vpop.f32.mrb[0].mxu0
      %v838 = vadd.f32 0.0, %v837
      %v839 = vpop.f32.mrb[0].mxu0
      %840 = vmatprep.mubr.bf16.mxu0 0
      %841 = vmatmul.mubr.bf16.gmra.mrb[0].mxu0 %v612
      %v842 = vpop.f32.mrb[0].mxu0
      %v843 = vadd.f32 0.0, %v842
      %v844 = vpop.f32.mrb[0].mxu0
      %v845 = vpop.f32.mrb[0].mxu0
      %v846 = vadd.f32 0.0, %v845
      %v847 = vpop.f32.mrb[0].mxu0
      %848 = vmatprep.mubr.bf16.mxu0 0
      %849 = vmatmul.mubr.bf16.gmra.mrb[0].mxu0 %v613
      %v850 = vpop.f32.mrb[0].mxu0
      %v851 = vadd.f32 0.0, %v850
      %v852 = vpop.f32.mrb[0].mxu0
      %v853 = vpop.f32.mrb[0].mxu0
      %v854 = vadd.f32 0.0, %v853
      %v855 = vpop.f32.mrb[0].mxu0
      %856 = vmatprep.mubr.bf16.mxu0 0
      %857 = vmatmul.mubr.bf16.gmra.mrb[0].mxu0 %v614
      %v858 = vpop.f32.mrb[0].mxu0
      %v859 = vadd.f32 0.0, %v858
      %v860 = vpop.f32.mrb[0].mxu0
      %v861 = vpop.f32.mrb[0].mxu0
      %v862 = vadd.f32 0.0, %v861
      %v863 = vpop.f32.mrb[0].mxu0
      %864 = vmatprep.mubr.bf16.mxu0 0
      %865 = vmatmul.mubr.bf16.gmra.mrb[0].mxu0 %v615
      %v866 = vpop.f32.mrb[0].mxu0
      %v867 = vadd.f32 0.0, %v866
      %v868 = vpop.f32.mrb[0].mxu0
      %v869 = vpop.f32.mrb[0].mxu0
      %v870 = vadd.f32 0.0, %v869
      %v871 = vpop.f32.mrb[0].mxu0
      %872 = vmatprep.mubr.bf16.mxu0 0
      %873 = vmatmul.mubr.bf16.gmra.mrb[0].mxu0 %v616
      %v874 = vpop.f32.mrb[0].mxu0
      %v875 = vadd.f32 0.0, %v874
      %v876 = vpop.f32.mrb[0].mxu0
      %v877 = vpop.f32.mrb[0].mxu0
      %v878 = vadd.f32 0.0, %v877
      %v879 = vpop.f32.mrb[0].mxu0
      %880 = vmatprep.mubr.bf16.mxu0 0
      %881 = vmatmul.mubr.bf16.gmra.mrb[0].mxu0 %v617
      %v882 = vpop.f32.mrb[0].mxu0
      %v883 = vadd.f32 0.0, %v882
      %v884 = vpop.f32.mrb[0].mxu0
      %v885 = vpop.f32.mrb[0].mxu0
      %v886 = vadd.f32 0.0, %v885
      %v887 = vpop.f32.mrb[0].mxu0
      %888 = vmatprep.mubr.bf16.mxu0 0
      %889 = vmatmul.mubr.bf16.gmra.mrb[0].mxu0 %v618
      %v890 = vpop.f32.mrb[0].mxu0
      %v891 = vadd.f32 0.0, %v890
      %v892 = vpop.f32.mrb[0].mxu0
      %v893 = vpop.f32.mrb[0].mxu0
      %v894 = vadd.f32 0.0, %v893
      %v895 = vpop.f32.mrb[0].mxu0
      %896 = vmatprep.mubr.bf16.mxu0 0
      %897 = vmatmul.mubr.bf16.gmra.mrb[0].mxu0 %v619
      %v898 = vpop.f32.mrb[0].mxu0
      %v899 = vadd.f32 0.0, %v898
      %v900 = vpop.f32.mrb[0].mxu0
      %v901 = vpop.f32.mrb[0].mxu0
      %v902 = vadd.f32 0.0, %v901
      %v903 = vpop.f32.mrb[0].mxu0
      %904 = vmatprep.mubr.bf16.mxu0 0
      %905 = vmatmul.mubr.bf16.gmra.mrb[0].mxu0 %v620
      %v906 = vpop.f32.mrb[0].mxu0
      %v907 = vadd.f32 0.0, %v906
      %v908 = vpop.f32.mrb[0].mxu0
      %v909 = vpop.f32.mrb[0].mxu0
      %v910 = vadd.f32 0.0, %v909
      %v911 = vpop.f32.mrb[0].mxu0
      %912 = vmatprep.mubr.bf16.mxu0 0
      %913 = vmatmul.mubr.bf16.gmra.mrb[0].mxu0 %v621
      %v914 = vpop.f32.mrb[0].mxu0
      %v915 = vadd.f32 0.0, %v914
      %v916 = vpop.f32.mrb[0].mxu0
      %v917 = vpop.f32.mrb[0].mxu0
      %v918 = vadd.f32 0.0, %v917
      %v919 = vpop.f32.mrb[0].mxu0
      %920 = vmatprep.mubr.bf16.mxu0 0
      %921 = vmatmul.mubr.bf16.gmra.mrb[0].mxu0 %v622
      %v922 = vpop.f32.mrb[0].mxu0
      %v923 = vadd.f32 0.0, %v922
      %v924 = vpop.f32.mrb[0].mxu0
      %v925 = vpop.f32.mrb[0].mxu0
      %v926 = vadd.f32 0.0, %v925
      %v927 = vpop.f32.mrb[0].mxu0
      %928 = vmatprep.mubr.bf16.mxu0 0
      %929 = vmatmul.mubr.bf16.gmra.mrb[0].mxu0 %v623
      %v930 = vpop.f32.mrb[0].mxu0
      %v931 = vadd.f32 0.0, %v930
      %v932 = vpop.f32.mrb[0].mxu0
      %v933 = vpop.f32.mrb[0].mxu0
      %v934 = vadd.f32 0.0, %v933
      %v935 = vpop.f32.mrb[0].mxu0
      %936 = vmatprep.mubr.bf16.mxu0 0
      %937 = vmatmul.mubr.bf16.gmra.mrb[0].mxu0 %v624
      %v938 = vpop.f32.mrb[0].mxu0
      %v939 = vadd.f32 0.0, %v938
      %v940 = vpop.f32.mrb[0].mxu0
      %v941 = vpop.f32.mrb[0].mxu0
      %v942 = vadd.f32 0.0, %v941
      %v943 = vpop.f32.mrb[0].mxu0
      %944 = vmatprep.mubr.bf16.mxu0 0
      %945 = vmatmul.mubr.bf16.gmra.mrb[0].mxu0 %v625
      %v946 = vpop.f32.mrb[0].mxu0
      %v947 = vadd.f32 0.0, %v946
      %v948 = vpop.f32.mrb[0].mxu0
      %v949 = vpop.f32.mrb[0].mxu0
      %v950 = vadd.f32 0.0, %v949
      %v951 = vpop.f32.mrb[0].mxu0
      %952 = vmatprep.mubr.bf16.mxu0 0
      %953 = vmatmul.mubr.bf16.gmra.mrb[0].mxu0 %v626
      %v954 = vpop.f32.mrb[0].mxu0
      %v955 = vadd.f32 0.0, %v954
      %v956 = vpop.f32.mrb[0].mxu0
      %v957 = vpop.f32.mrb[0].mxu0
      %v958 = vadd.f32 0.0, %v957
      %v959 = vpop.f32.mrb[0].mxu0
      %960 = vmatprep.mubr.bf16.mxu0 0
      %961 = vmatmul.mubr.bf16.gmra.mrb[0].mxu0 %v627
      %v962 = vpop.f32.mrb[0].mxu0
      %v963 = vadd.f32 0.0, %v962
      %v964 = vpop.f32.mrb[0].mxu0
      %v965 = vpop.f32.mrb[0].mxu0
      %v966 = vadd.f32 0.0, %v965
      %v967 = vpop.f32.mrb[0].mxu0
      %968 = vmatprep.mubr.bf16.mxu0 0
      %969 = vmatmul.mubr.bf16.gmra.mrb[0].mxu0 %v628
      %v970 = vpop.f32.mrb[0].mxu0
      %v971 = vadd.f32 0.0, %v970
      %v972 = vpop.f32.mrb[0].mxu0
      %v973 = vpop.f32.mrb[0].mxu0
      %v974 = vadd.f32 0.0, %v973
      %v975 = vpop.f32.mrb[0].mxu0
      %976 = vmatprep.mubr.bf16.mxu0 0
      %977 = vmatmul.mubr.bf16.gmra.mrb[0].mxu0 %v629
      %v978 = vpop.f32.mrb[0].mxu0
      %v979 = vadd.f32 0.0, %v978
      %v980 = vpop.f32.mrb[0].mxu0
      %v981 = vpop.f32.mrb[0].mxu0
      %v982 = vadd.f32 0.0, %v981
      %v983 = vpop.f32.mrb[0].mxu0
      %984 = vmatprep.mubr.bf16.mxu0 0
      %985 = vmatmul.mubr.bf16.gmra.mrb[0].mxu0 %v630
      %v986 = vpop.f32.mrb[0].mxu0
      %v987 = vadd.f32 0.0, %v986
      %v988 = vpop.f32.mrb[0].mxu0
      %v989 = vpop.f32.mrb[0].mxu0
      %v990 = vadd.f32 0.0, %v989
      %v991 = vpop.f32.mrb[0].mxu0
      %992 = vmatprep.mubr.bf16.mxu0 0
      %993 = vmatmul.mubr.bf16.gmra.mrb[0].mxu0 %v631
      %v994 = vpop.f32.mrb[0].mxu0
      %v995 = vadd.f32 0.0, %v994
      %v996 = vpop.f32.mrb[0].mxu0
      %v997 = vpop.f32.mrb[0].mxu0
      %v998 = vadd.f32 0.0, %v997
      %v999 = vpop.f32.mrb[0].mxu0
      %1000 = vdwg.mxu0
      %v1001 = vadd.f32 %v328, %v747
      %v1002 = vadd.f32 %v329, %v750
      %v1003 = vadd.f32 %v330, %v755
      %v1004 = vadd.f32 %v331, %v758
      %v1005 = vadd.f32 %v332, %v763
      %v1006 = vadd.f32 %v333, %v766
      %v1007 = vadd.f32 %v334, %v771
      %v1008 = vadd.f32 %v335, %v774
      %v1009 = vadd.f32 %v336, %v779
      %v1010 = vadd.f32 %v337, %v782
      %v1011 = vadd.f32 %v338, %v787
      %v1012 = vadd.f32 %v339, %v790
      %v1013 = vadd.f32 %v340, %v795
      %v1014 = vadd.f32 %v341, %v798
      %v1015 = vadd.f32 %v342, %v803
      %v1016 = vadd.f32 %v343, %v806
      %v1017 = vadd.f32 %v344, %v811
      %v1018 = vadd.f32 %v345, %v814
      %v1019 = vadd.f32 %v346, %v819
      %v1020 = vadd.f32 %v347, %v822
      %v1021 = vadd.f32 %v348, %v827
      %v1022 = vadd.f32 %v349, %v830
      %v1023 = vadd.f32 %v350, %v835
      %v1024 = vadd.f32 %v351, %v838
      %v1025 = vadd.f32 %v352, %v843
      %v1026 = vadd.f32 %v353, %v846
      %v1027 = vadd.f32 %v354, %v851
      %v1028 = vadd.f32 %v355, %v854
      %v1029 = vadd.f32 %v356, %v859
      %v1030 = vadd.f32 %v357, %v862
      %v1031 = vadd.f32 %v358, %v867
      %v1032 = vadd.f32 %v359, %v870
      %v1033 = vadd.f32 %v360, %v875
      %v1034 = vadd.f32 %v361, %v878
      %v1035 = vadd.f32 %v362, %v883
      %v1036 = vadd.f32 %v363, %v886
      %v1037 = vadd.f32 %v364, %v891
      %v1038 = vadd.f32 %v365, %v894
      %v1039 = vadd.f32 %v366, %v899
      %v1040 = vadd.f32 %v367, %v902
      %v1041 = vadd.f32 %v368, %v907
      %v1042 = vadd.f32 %v369, %v910
      %v1043 = vadd.f32 %v370, %v915
      %v1044 = vadd.f32 %v371, %v918
      %v1045 = vadd.f32 %v372, %v923
      %v1046 = vadd.f32 %v373, %v926
      %v1047 = vadd.f32 %v374, %v931
      %v1048 = vadd.f32 %v375, %v934
      %v1049 = vadd.f32 %v376, %v939
      %v1050 = vadd.f32 %v377, %v942
      %v1051 = vadd.f32 %v378, %v947
      %v1052 = vadd.f32 %v379, %v950
      %v1053 = vadd.f32 %v380, %v955
      %v1054 = vadd.f32 %v381, %v958
      %v1055 = vadd.f32 %v382, %v963
      %v1056 = vadd.f32 %v383, %v966
      %v1057 = vadd.f32 %v384, %v971
      %v1058 = vadd.f32 %v385, %v974
      %v1059 = vadd.f32 %v386, %v979
      %v1060 = vadd.f32 %v387, %v982
      %v1061 = vadd.f32 %v388, %v987
      %v1062 = vadd.f32 %v389, %v990
      %v1063 = vadd.f32 %v390, %v995
      %v1064 = vadd.f32 %v391, %v998
      %1065 = vst [vmem:[#allocation2] sm:$0xff] %v1001
      %1066 = vst [vmem:[#allocation2 + $0x8] sm:$0xff] %v1002
      %1067 = vst [vmem:[#allocation2 + $0x10] sm:$0xff] %v1003
      %1068 = vst [vmem:[#allocation2 + $0x18] sm:$0xff] %v1004
      %1069 = vst [vmem:[#allocation2 + $0x20] sm:$0xff] %v1005
      %1070 = vst [vmem:[#allocation2 + $0x28] sm:$0xff] %v1006
      %1071 = vst [vmem:[#allocation2 + $0x30] sm:$0xff] %v1007
      %1072 = vst [vmem:[#allocation2 + $0x38] sm:$0xff] %v1008
      %1073 = vst [vmem:[#allocation2 + $0x40] sm:$0xff] %v1009
      %1074 = vst [vmem:[#allocation2 + $0x48] sm:$0xff] %v1010
      %1075 = vst [vmem:[#allocation2 + $0x50] sm:$0xff] %v1011
      %1076 = vst [vmem:[#allocation2 + $0x58] sm:$0xff] %v1012
      %1077 = vst [vmem:[#allocation2 + $0x60] sm:$0xff] %v1013
      %1078 = vst [vmem:[#allocation2 + $0x68] sm:$0xff] %v1014
      %1079 = vst [vmem:[#allocation2 + $0x70] sm:$0xff] %v1015
      %1080 = vst [vmem:[#allocation2 + $0x78] sm:$0xff] %v1016
      %1081 = vst [vmem:[#allocation2 + $0x80] sm:$0xff] %v1017
      %1082 = vst [vmem:[#allocation2 + $0x88] sm:$0xff] %v1018
      %1083 = vst [vmem:[#allocation2 + $0x90] sm:$0xff] %v1019
      %1084 = vst [vmem:[#allocation2 + $0x98] sm:$0xff] %v1020
      %1085 = vst [vmem:[#allocation2 + $0xa0] sm:$0xff] %v1021
      %1086 = vst [vmem:[#allocation2 + $0xa8] sm:$0xff] %v1022
      %1087 = vst [vmem:[#allocation2 + $0xb0] sm:$0xff] %v1023
      %1088 = vst [vmem:[#allocation2 + $0xb8] sm:$0xff] %v1024
      %1089 = vst [vmem:[#allocation2 + $0xc0] sm:$0xff] %v1025
      %1090 = vst [vmem:[#allocation2 + $0xc8] sm:$0xff] %v1026
      %1091 = vst [vmem:[#allocation2 + $0xd0] sm:$0xff] %v1027
      %1092 = vst [vmem:[#allocation2 + $0xd8] sm:$0xff] %v1028
      %1093 = vst [vmem:[#allocation2 + $0xe0] sm:$0xff] %v1029
      %1094 = vst [vmem:[#allocation2 + $0xe8] sm:$0xff] %v1030
      %1095 = vst [vmem:[#allocation2 + $0xf0] sm:$0xff] %v1031
      %1096 = vst [vmem:[#allocation2 + $0xf8] sm:$0xff] %v1032
      %1097 = vst [vmem:[#allocation2 + $0x100] sm:$0xff] %v1033
      %1098 = vst [vmem:[#allocation2 + $0x108] sm:$0xff] %v1034
      %1099 = vst [vmem:[#allocation2 + $0x110] sm:$0xff] %v1035
      %1100 = vst [vmem:[#allocation2 + $0x118] sm:$0xff] %v1036
      %1101 = vst [vmem:[#allocation2 + $0x120] sm:$0xff] %v1037
      %1102 = vst [vmem:[#allocation2 + $0x128] sm:$0xff] %v1038
      %1103 = vst [vmem:[#allocation2 + $0x130] sm:$0xff] %v1039
      %1104 = vst [vmem:[#allocation2 + $0x138] sm:$0xff] %v1040
      %1105 = vst [vmem:[#allocation2 + $0x140] sm:$0xff] %v1041
      %1106 = vst [vmem:[#allocation2 + $0x148] sm:$0xff] %v1042
      %1107 = vst [vmem:[#allocation2 + $0x150] sm:$0xff] %v1043
      %1108 = vst [vmem:[#allocation2 + $0x158] sm:$0xff] %v1044
      %1109 = vst [vmem:[#allocation2 + $0x160] sm:$0xff] %v1045
      %1110 = vst [vmem:[#allocation2 + $0x168] sm:$0xff] %v1046
      %1111 = vst [vmem:[#allocation2 + $0x170] sm:$0xff] %v1047
      %1112 = vst [vmem:[#allocation2 + $0x178] sm:$0xff] %v1048
      %1113 = vst [vmem:[#allocation2 + $0x180] sm:$0xff] %v1049
      %1114 = vst [vmem:[#allocation2 + $0x188] sm:$0xff] %v1050
      %1115 = vst [vmem:[#allocation2 + $0x190] sm:$0xff] %v1051
      %1116 = vst [vmem:[#allocation2 + $0x198] sm:$0xff] %v1052
      %1117 = vst [vmem:[#allocation2 + $0x1a0] sm:$0xff] %v1053
      %1118 = vst [vmem:[#allocation2 + $0x1a8] sm:$0xff] %v1054
      %1119 = vst [vmem:[#allocation2 + $0x1b0] sm:$0xff] %v1055
      %1120 = vst [vmem:[#allocation2 + $0x1b8] sm:$0xff] %v1056
      %1121 = vst [vmem:[#allocation2 + $0x1c0] sm:$0xff] %v1057
      %1122 = vst [vmem:[#allocation2 + $0x1c8] sm:$0xff] %v1058
      %1123 = vst [vmem:[#allocation2 + $0x1d0] sm:$0xff] %v1059
      %1124 = vst [vmem:[#allocation2 + $0x1d8] sm:$0xff] %v1060
      %1125 = vst [vmem:[#allocation2 + $0x1e0] sm:$0xff] %v1061
      %1126 = vst [vmem:[#allocation2 + $0x1e8] sm:$0xff] %v1062
      %1127 = vst [vmem:[#allocation2 + $0x1f0] sm:$0xff] %v1063
      %1128 = vst [vmem:[#allocation2 + $0x1f8] sm:$0xff] %v1064
      // Predicated region
      $region37: #{_gemm_call.1} parent=31 // pred_check
        %p1129 = pneg %p260
      $region38: #{_gemm_call.1} parent=31 // pred_check_branch
        %1131 = sbr.rel (%p1129) target = $region40
      $region39: #{_gemm_call.1} parent=31 // pred_region
        %v1132 = vld [vmem:[#allocation2] sm:$0xff]
        %v1133 = vld [vmem:[#allocation2 + $0x8] sm:$0xff]
        %v1134 = vld [vmem:[#allocation2 + $0x10] sm:$0xff]
        %v1135 = vld [vmem:[#allocation2 + $0x18] sm:$0xff]
        %v1136 = vld [vmem:[#allocation2 + $0x20] sm:$0xff]
        %v1137 = vld [vmem:[#allocation2 + $0x28] sm:$0xff]
        %v1138 = vld [vmem:[#allocation2 + $0x30] sm:$0xff]
        %v1139 = vld [vmem:[#allocation2 + $0x38] sm:$0xff]
        %v1140 = vld [vmem:[#allocation2 + $0x40] sm:$0xff]
        %v1141 = vld [vmem:[#allocation2 + $0x48] sm:$0xff]
        %v1142 = vld [vmem:[#allocation2 + $0x50] sm:$0xff]
        %v1143 = vld [vmem:[#allocation2 + $0x58] sm:$0xff]
        %v1144 = vld [vmem:[#allocation2 + $0x60] sm:$0xff]
        %v1145 = vld [vmem:[#allocation2 + $0x68] sm:$0xff]
        %v1146 = vld [vmem:[#allocation2 + $0x70] sm:$0xff]
        %v1147 = vld [vmem:[#allocation2 + $0x78] sm:$0xff]
        %v1148 = vld [vmem:[#allocation2 + $0x80] sm:$0xff]
        %v1149 = vld [vmem:[#allocation2 + $0x88] sm:$0xff]
        %v1150 = vld [vmem:[#allocation2 + $0x90] sm:$0xff]
        %v1151 = vld [vmem:[#allocation2 + $0x98] sm:$0xff]
        %v1152 = vld [vmem:[#allocation2 + $0xa0] sm:$0xff]
        %v1153 = vld [vmem:[#allocation2 + $0xa8] sm:$0xff]
        %v1154 = vld [vmem:[#allocation2 + $0xb0] sm:$0xff]
        %v1155 = vld [vmem:[#allocation2 + $0xb8] sm:$0xff]
        %v1156 = vld [vmem:[#allocation2 + $0xc0] sm:$0xff]
        %v1157 = vld [vmem:[#allocation2 + $0xc8] sm:$0xff]
        %v1158 = vld [vmem:[#allocation2 + $0xd0] sm:$0xff]
        %v1159 = vld [vmem:[#allocation2 + $0xd8] sm:$0xff]
        %v1160 = vld [vmem:[#allocation2 + $0xe0] sm:$0xff]
        %v1161 = vld [vmem:[#allocation2 + $0xe8] sm:$0xff]
        %v1162 = vld [vmem:[#allocation2 + $0xf0] sm:$0xff]
        %v1163 = vld [vmem:[#allocation2 + $0xf8] sm:$0xff]
        %v1164 = vld [vmem:[#allocation2 + $0x100] sm:$0xff]
        %v1165 = vld [vmem:[#allocation2 + $0x108] sm:$0xff]
        %v1166 = vld [vmem:[#allocation2 + $0x110] sm:$0xff]
        %v1167 = vld [vmem:[#allocation2 + $0x118] sm:$0xff]
        %v1168 = vld [vmem:[#allocation2 + $0x120] sm:$0xff]
        %v1169 = vld [vmem:[#allocation2 + $0x128] sm:$0xff]
        %v1170 = vld [vmem:[#allocation2 + $0x130] sm:$0xff]
        %v1171 = vld [vmem:[#allocation2 + $0x138] sm:$0xff]
        %v1172 = vld [vmem:[#allocation2 + $0x140] sm:$0xff]
        %v1173 = vld [vmem:[#allocation2 + $0x148] sm:$0xff]
        %v1174 = vld [vmem:[#allocation2 + $0x150] sm:$0xff]
        %v1175 = vld [vmem:[#allocation2 + $0x158] sm:$0xff]
        %v1176 = vld [vmem:[#allocation2 + $0x160] sm:$0xff]
        %v1177 = vld [vmem:[#allocation2 + $0x168] sm:$0xff]
        %v1178 = vld [vmem:[#allocation2 + $0x170] sm:$0xff]
        %v1179 = vld [vmem:[#allocation2 + $0x178] sm:$0xff]
        %v1180 = vld [vmem:[#allocation2 + $0x180] sm:$0xff]
        %v1181 = vld [vmem:[#allocation2 + $0x188] sm:$0xff]
        %v1182 = vld [vmem:[#allocation2 + $0x190] sm:$0xff]
        %v1183 = vld [vmem:[#allocation2 + $0x198] sm:$0xff]
        %v1184 = vld [vmem:[#allocation2 + $0x1a0] sm:$0xff]
        %v1185 = vld [vmem:[#allocation2 + $0x1a8] sm:$0xff]
        %v1186 = vld [vmem:[#allocation2 + $0x1b0] sm:$0xff]
        %v1187 = vld [vmem:[#allocation2 + $0x1b8] sm:$0xff]
        %v1188 = vld [vmem:[#allocation2 + $0x1c0] sm:$0xff]
        %v1189 = vld [vmem:[#allocation2 + $0x1c8] sm:$0xff]
        %v1190 = vld [vmem:[#allocation2 + $0x1d0] sm:$0xff]
        %v1191 = vld [vmem:[#allocation2 + $0x1d8] sm:$0xff]
        %v1192 = vld [vmem:[#allocation2 + $0x1e0] sm:$0xff]
        %v1193 = vld [vmem:[#allocation2 + $0x1e8] sm:$0xff]
        %v1194 = vld [vmem:[#allocation2 + $0x1f0] sm:$0xff]
        %v1195 = vld [vmem:[#allocation2 + $0x1f8] sm:$0xff]
        %v1196 = vld [vmem:[%s249] sm:$0x1]
        %v1198 = vlaneseq
        %v1199 = vshrl.u32 %v1198, 7
        %v1200 = vsub.s32 0, %v1199
        %v1201 = vrot.slane %v1196, %v1200
        %v1203 = vadd.f32 %v1132, %v1201
        %v1204 = vadd.f32 %v1133, %v1201
        %v1205 = vadd.f32 %v1134, %v1201
        %v1206 = vadd.f32 %v1135, %v1201
        %v1207 = vadd.f32 %v1136, %v1201
        %v1208 = vadd.f32 %v1137, %v1201
        %v1209 = vadd.f32 %v1138, %v1201
        %v1210 = vadd.f32 %v1139, %v1201
        %v1211 = vadd.f32 %v1140, %v1201
        %v1212 = vadd.f32 %v1141, %v1201
        %v1213 = vadd.f32 %v1142, %v1201
        %v1214 = vadd.f32 %v1143, %v1201
        %v1215 = vadd.f32 %v1144, %v1201
        %v1216 = vadd.f32 %v1145, %v1201
        %v1217 = vadd.f32 %v1146, %v1201
        %v1218 = vadd.f32 %v1147, %v1201
        %v1219 = vadd.f32 %v1148, %v1201
        %v1220 = vadd.f32 %v1149, %v1201
        %v1221 = vadd.f32 %v1150, %v1201
        %v1222 = vadd.f32 %v1151, %v1201
        %v1223 = vadd.f32 %v1152, %v1201
        %v1224 = vadd.f32 %v1153, %v1201
        %v1225 = vadd.f32 %v1154, %v1201
        %v1226 = vadd.f32 %v1155, %v1201
        %v1227 = vadd.f32 %v1156, %v1201
        %v1228 = vadd.f32 %v1157, %v1201
        %v1229 = vadd.f32 %v1158, %v1201
        %v1230 = vadd.f32 %v1159, %v1201
        %v1231 = vadd.f32 %v1160, %v1201
        %v1232 = vadd.f32 %v1161, %v1201
        %v1233 = vadd.f32 %v1162, %v1201
        %v1234 = vadd.f32 %v1163, %v1201
        %v1235 = vadd.f32 %v1164, %v1201
        %v1236 = vadd.f32 %v1165, %v1201
        %v1237 = vadd.f32 %v1166, %v1201
        %v1238 = vadd.f32 %v1167, %v1201
        %v1239 = vadd.f32 %v1168, %v1201
        %v1240 = vadd.f32 %v1169, %v1201
        %v1241 = vadd.f32 %v1170, %v1201
        %v1242 = vadd.f32 %v1171, %v1201
        %v1243 = vadd.f32 %v1172, %v1201
        %v1244 = vadd.f32 %v1173, %v1201
        %v1245 = vadd.f32 %v1174, %v1201
        %v1246 = vadd.f32 %v1175, %v1201
        %v1247 = vadd.f32 %v1176, %v1201
        %v1248 = vadd.f32 %v1177, %v1201
        %v1249 = vadd.f32 %v1178, %v1201
        %v1250 = vadd.f32 %v1179, %v1201
        %v1251 = vadd.f32 %v1180, %v1201
        %v1252 = vadd.f32 %v1181, %v1201
        %v1253 = vadd.f32 %v1182, %v1201
        %v1254 = vadd.f32 %v1183, %v1201
        %v1255 = vadd.f32 %v1184, %v1201
        %v1256 = vadd.f32 %v1185, %v1201
        %v1257 = vadd.f32 %v1186, %v1201
        %v1258 = vadd.f32 %v1187, %v1201
        %v1259 = vadd.f32 %v1188, %v1201
        %v1260 = vadd.f32 %v1189, %v1201
        %v1261 = vadd.f32 %v1190, %v1201
        %v1262 = vadd.f32 %v1191, %v1201
        %v1263 = vadd.f32 %v1192, %v1201
        %v1264 = vadd.f32 %v1193, %v1201
        %v1265 = vadd.f32 %v1194, %v1201
        %v1266 = vadd.f32 %v1195, %v1201
        %v1267 = vmax.f32 %v1203, 0.0
        %v1268 = vmax.f32 %v1204, 0.0
        %v1269 = vmax.f32 %v1205, 0.0
        %v1270 = vmax.f32 %v1206, 0.0
        %v1271 = vmax.f32 %v1207, 0.0
        %v1272 = vmax.f32 %v1208, 0.0
        %v1273 = vmax.f32 %v1209, 0.0
        %v1274 = vmax.f32 %v1210, 0.0
        %v1275 = vmax.f32 %v1211, 0.0
        %v1276 = vmax.f32 %v1212, 0.0
        %v1277 = vmax.f32 %v1213, 0.0
        %v1278 = vmax.f32 %v1214, 0.0
        %v1279 = vmax.f32 %v1215, 0.0
        %v1280 = vmax.f32 %v1216, 0.0
        %v1281 = vmax.f32 %v1217, 0.0
        %v1282 = vmax.f32 %v1218, 0.0
        %v1283 = vmax.f32 %v1219, 0.0
        %v1284 = vmax.f32 %v1220, 0.0
        %v1285 = vmax.f32 %v1221, 0.0
        %v1286 = vmax.f32 %v1222, 0.0
        %v1287 = vmax.f32 %v1223, 0.0
        %v1288 = vmax.f32 %v1224, 0.0
        %v1289 = vmax.f32 %v1225, 0.0
        %v1290 = vmax.f32 %v1226, 0.0
        %v1291 = vmax.f32 %v1227, 0.0
        %v1292 = vmax.f32 %v1228, 0.0
        %v1293 = vmax.f32 %v1229, 0.0
        %v1294 = vmax.f32 %v1230, 0.0
        %v1295 = vmax.f32 %v1231, 0.0
        %v1296 = vmax.f32 %v1232, 0.0
        %v1297 = vmax.f32 %v1233, 0.0
        %v1298 = vmax.f32 %v1234, 0.0
        %v1299 = vmax.f32 %v1235, 0.0
        %v1300 = vmax.f32 %v1236, 0.0
        %v1301 = vmax.f32 %v1237, 0.0
        %v1302 = vmax.f32 %v1238, 0.0
        %v1303 = vmax.f32 %v1239, 0.0
        %v1304 = vmax.f32 %v1240, 0.0
        %v1305 = vmax.f32 %v1241, 0.0
        %v1306 = vmax.f32 %v1242, 0.0
        %v1307 = vmax.f32 %v1243, 0.0
        %v1308 = vmax.f32 %v1244, 0.0
        %v1309 = vmax.f32 %v1245, 0.0
        %v1310 = vmax.f32 %v1246, 0.0
        %v1311 = vmax.f32 %v1247, 0.0
        %v1312 = vmax.f32 %v1248, 0.0
        %v1313 = vmax.f32 %v1249, 0.0
        %v1314 = vmax.f32 %v1250, 0.0
        %v1315 = vmax.f32 %v1251, 0.0
        %v1316 = vmax.f32 %v1252, 0.0
        %v1317 = vmax.f32 %v1253, 0.0
        %v1318 = vmax.f32 %v1254, 0.0
        %v1319 = vmax.f32 %v1255, 0.0
        %v1320 = vmax.f32 %v1256, 0.0
        %v1321 = vmax.f32 %v1257, 0.0
        %v1322 = vmax.f32 %v1258, 0.0
        %v1323 = vmax.f32 %v1259, 0.0
        %v1324 = vmax.f32 %v1260, 0.0
        %v1325 = vmax.f32 %v1261, 0.0
        %v1326 = vmax.f32 %v1262, 0.0
        %v1327 = vmax.f32 %v1263, 0.0
        %v1328 = vmax.f32 %v1264, 0.0
        %v1329 = vmax.f32 %v1265, 0.0
        %v1330 = vmax.f32 %v1266, 0.0
        %v1331 = vpack.c.bf16 %v1268, %v1267
        %v1332 = vpack.c.bf16 %v1270, %v1269
        %v1333 = vpack.c.bf16 %v1272, %v1271
        %v1334 = vpack.c.bf16 %v1274, %v1273
        %v1335 = vpack.c.bf16 %v1276, %v1275
        %v1336 = vpack.c.bf16 %v1278, %v1277
        %v1337 = vpack.c.bf16 %v1280, %v1279
        %v1338 = vpack.c.bf16 %v1282, %v1281
        %v1339 = vpack.c.bf16 %v1284, %v1283
        %v1340 = vpack.c.bf16 %v1286, %v1285
        %v1341 = vpack.c.bf16 %v1288, %v1287
        %v1342 = vpack.c.bf16 %v1290, %v1289
        %v1343 = vpack.c.bf16 %v1292, %v1291
        %v1344 = vpack.c.bf16 %v1294, %v1293
        %v1345 = vpack.c.bf16 %v1296, %v1295
        %v1346 = vpack.c.bf16 %v1298, %v1297
        %v1347 = vpack.c.bf16 %v1300, %v1299
        %v1348 = vpack.c.bf16 %v1302, %v1301
        %v1349 = vpack.c.bf16 %v1304, %v1303
        %v1350 = vpack.c.bf16 %v1306, %v1305
        %v1351 = vpack.c.bf16 %v1308, %v1307
        %v1352 = vpack.c.bf16 %v1310, %v1309
        %v1353 = vpack.c.bf16 %v1312, %v1311
        %v1354 = vpack.c.bf16 %v1314, %v1313
        %v1355 = vpack.c.bf16 %v1316, %v1315
        %v1356 = vpack.c.bf16 %v1318, %v1317
        %v1357 = vpack.c.bf16 %v1320, %v1319
        %v1358 = vpack.c.bf16 %v1322, %v1321
        %v1359 = vpack.c.bf16 %v1324, %v1323
        %v1360 = vpack.c.bf16 %v1326, %v1325
        %v1361 = vpack.c.bf16 %v1328, %v1327
        %v1362 = vpack.c.bf16 %v1330, %v1329
        %v1395 = vunpack.c.l.b16 %v1331
        %v1396 = vunpack.c.h.b16 %v1331
        %v1397 = vunpack.c.l.b16 %v1332
        %v1398 = vunpack.c.h.b16 %v1332
        %v1399 = vunpack.c.l.b16 %v1333
        %v1400 = vunpack.c.h.b16 %v1333
        %v1401 = vunpack.c.l.b16 %v1334
        %v1402 = vunpack.c.h.b16 %v1334
        %v1403 = vunpack.c.l.b16 %v1335
        %v1404 = vunpack.c.h.b16 %v1335
        %v1405 = vunpack.c.l.b16 %v1336
        %v1406 = vunpack.c.h.b16 %v1336
        %v1407 = vunpack.c.l.b16 %v1337
        %v1408 = vunpack.c.h.b16 %v1337
        %v1409 = vunpack.c.l.b16 %v1338
        %v1410 = vunpack.c.h.b16 %v1338
        %v1411 = vunpack.c.l.b16 %v1339
        %v1412 = vunpack.c.h.b16 %v1339
        %v1413 = vunpack.c.l.b16 %v1340
        %v1414 = vunpack.c.h.b16 %v1340
        %v1415 = vunpack.c.l.b16 %v1341
        %v1416 = vunpack.c.h.b16 %v1341
        %v1417 = vunpack.c.l.b16 %v1342
        %v1418 = vunpack.c.h.b16 %v1342
        %v1419 = vunpack.c.l.b16 %v1343
        %v1420 = vunpack.c.h.b16 %v1343
        %v1421 = vunpack.c.l.b16 %v1344
        %v1422 = vunpack.c.h.b16 %v1344
        %v1423 = vunpack.c.l.b16 %v1345
        %v1424 = vunpack.c.h.b16 %v1345
        %v1425 = vunpack.c.l.b16 %v1346
        %v1426 = vunpack.c.h.b16 %v1346
        %v1427 = vunpack.c.l.b16 %v1347
        %v1428 = vunpack.c.h.b16 %v1347
        %v1429 = vunpack.c.l.b16 %v1348
        %v1430 = vunpack.c.h.b16 %v1348
        %v1431 = vunpack.c.l.b16 %v1349
        %v1432 = vunpack.c.h.b16 %v1349
        %v1433 = vunpack.c.l.b16 %v1350
        %v1434 = vunpack.c.h.b16 %v1350
        %v1435 = vunpack.c.l.b16 %v1351
        %v1436 = vunpack.c.h.b16 %v1351
        %v1437 = vunpack.c.l.b16 %v1352
        %v1438 = vunpack.c.h.b16 %v1352
        %v1439 = vunpack.c.l.b16 %v1353
        %v1440 = vunpack.c.h.b16 %v1353
        %v1441 = vunpack.c.l.b16 %v1354
        %v1442 = vunpack.c.h.b16 %v1354
        %v1443 = vunpack.c.l.b16 %v1355
        %v1444 = vunpack.c.h.b16 %v1355
        %v1445 = vunpack.c.l.b16 %v1356
        %v1446 = vunpack.c.h.b16 %v1356
        %v1447 = vunpack.c.l.b16 %v1357
        %v1448 = vunpack.c.h.b16 %v1357
        %v1449 = vunpack.c.l.b16 %v1358
        %v1450 = vunpack.c.h.b16 %v1358
        %v1451 = vunpack.c.l.b16 %v1359
        %v1452 = vunpack.c.h.b16 %v1359
        %v1453 = vunpack.c.l.b16 %v1360
        %v1454 = vunpack.c.h.b16 %v1360
        %v1455 = vunpack.c.l.b16 %v1361
        %v1456 = vunpack.c.h.b16 %v1361
        %v1457 = vunpack.c.l.b16 %v1362
        %v1458 = vunpack.c.h.b16 %v1362
        %v1459 = vpack.c.b16 %v1395, %v1395
        %v1460 = vpack.c.b16 %v1396, %v1396
        %v1461 = vpack.c.b16 %v1397, %v1397
        %v1462 = vpack.c.b16 %v1398, %v1398
        %v1463 = vpack.c.b16 %v1399, %v1399
        %v1464 = vpack.c.b16 %v1400, %v1400
        %v1465 = vpack.c.b16 %v1401, %v1401
        %v1466 = vpack.c.b16 %v1402, %v1402
        %v1467 = vpack.c.b16 %v1403, %v1403
        %v1468 = vpack.c.b16 %v1404, %v1404
        %v1469 = vpack.c.b16 %v1405, %v1405
        %v1470 = vpack.c.b16 %v1406, %v1406
        %v1471 = vpack.c.b16 %v1407, %v1407
        %v1472 = vpack.c.b16 %v1408, %v1408
        %v1473 = vpack.c.b16 %v1409, %v1409
        %v1474 = vpack.c.b16 %v1410, %v1410
        %v1475 = vpack.c.b16 %v1411, %v1411
        %v1476 = vpack.c.b16 %v1412, %v1412
        %v1477 = vpack.c.b16 %v1413, %v1413
        %v1478 = vpack.c.b16 %v1414, %v1414
        %v1479 = vpack.c.b16 %v1415, %v1415
        %v1480 = vpack.c.b16 %v1416, %v1416
        %v1481 = vpack.c.b16 %v1417, %v1417
        %v1482 = vpack.c.b16 %v1418, %v1418
        %v1483 = vpack.c.b16 %v1419, %v1419
        %v1484 = vpack.c.b16 %v1420, %v1420
        %v1485 = vpack.c.b16 %v1421, %v1421
        %v1486 = vpack.c.b16 %v1422, %v1422
        %v1487 = vpack.c.b16 %v1423, %v1423
        %v1488 = vpack.c.b16 %v1424, %v1424
        %v1489 = vpack.c.b16 %v1425, %v1425
        %v1490 = vpack.c.b16 %v1426, %v1426
        %v1491 = vpack.c.b16 %v1427, %v1427
        %v1492 = vpack.c.b16 %v1428, %v1428
        %v1493 = vpack.c.b16 %v1429, %v1429
        %v1494 = vpack.c.b16 %v1430, %v1430
        %v1495 = vpack.c.b16 %v1431, %v1431
        %v1496 = vpack.c.b16 %v1432, %v1432
        %v1497 = vpack.c.b16 %v1433, %v1433
        %v1498 = vpack.c.b16 %v1434, %v1434
        %v1499 = vpack.c.b16 %v1435, %v1435
        %v1500 = vpack.c.b16 %v1436, %v1436
        %v1501 = vpack.c.b16 %v1437, %v1437
        %v1502 = vpack.c.b16 %v1438, %v1438
        %v1503 = vpack.c.b16 %v1439, %v1439
        %v1504 = vpack.c.b16 %v1440, %v1440
        %v1505 = vpack.c.b16 %v1441, %v1441
        %v1506 = vpack.c.b16 %v1442, %v1442
        %v1507 = vpack.c.b16 %v1443, %v1443
        %v1508 = vpack.c.b16 %v1444, %v1444
        %v1509 = vpack.c.b16 %v1445, %v1445
        %v1510 = vpack.c.b16 %v1446, %v1446
        %v1511 = vpack.c.b16 %v1447, %v1447
        %v1512 = vpack.c.b16 %v1448, %v1448
        %v1513 = vpack.c.b16 %v1449, %v1449
        %v1514 = vpack.c.b16 %v1450, %v1450
        %v1515 = vpack.c.b16 %v1451, %v1451
        %v1516 = vpack.c.b16 %v1452, %v1452
        %v1517 = vpack.c.b16 %v1453, %v1453
        %v1518 = vpack.c.b16 %v1454, %v1454
        %v1519 = vpack.c.b16 %v1455, %v1455
        %v1520 = vpack.c.b16 %v1456, %v1456
        %v1521 = vpack.c.b16 %v1457, %v1457
        %v1522 = vpack.c.b16 %v1458, %v1458
        %1587 = vst [vmem:[%s257] sm:$0xf] %v1459
        %1588 = vst [vmem:[%s257 + $0x4] sm:$0xf] %v1460
        %1589 = vst [vmem:[%s257 + $0x8] sm:$0xf] %v1461
        %1590 = vst [vmem:[%s257 + $0xc] sm:$0xf] %v1462
        %1591 = vst [vmem:[%s257 + $0x10] sm:$0xf] %v1463
        %1592 = vst [vmem:[%s257 + $0x14] sm:$0xf] %v1464
        %1593 = vst [vmem:[%s257 + $0x18] sm:$0xf] %v1465
        %1594 = vst [vmem:[%s257 + $0x1c] sm:$0xf] %v1466
        %1595 = vst [vmem:[%s257 + $0x20] sm:$0xf] %v1467
        %1596 = vst [vmem:[%s257 + $0x24] sm:$0xf] %v1468
        %1597 = vst [vmem:[%s257 + $0x28] sm:$0xf] %v1469
        %1598 = vst [vmem:[%s257 + $0x2c] sm:$0xf] %v1470
        %1599 = vst [vmem:[%s257 + $0x30] sm:$0xf] %v1471
        %1600 = vst [vmem:[%s257 + $0x34] sm:$0xf] %v1472
        %1601 = vst [vmem:[%s257 + $0x38] sm:$0xf] %v1473
        %1602 = vst [vmem:[%s257 + $0x3c] sm:$0xf] %v1474
        %1603 = vst [vmem:[%s257 + $0x40] sm:$0xf] %v1475
        %1604 = vst [vmem:[%s257 + $0x44] sm:$0xf] %v1476
        %1605 = vst [vmem:[%s257 + $0x48] sm:$0xf] %v1477
        %1606 = vst [vmem:[%s257 + $0x4c] sm:$0xf] %v1478
        %1607 = vst [vmem:[%s257 + $0x50] sm:$0xf] %v1479
        %1608 = vst [vmem:[%s257 + $0x54] sm:$0xf] %v1480
        %1609 = vst [vmem:[%s257 + $0x58] sm:$0xf] %v1481
        %1610 = vst [vmem:[%s257 + $0x5c] sm:$0xf] %v1482
        %1611 = vst [vmem:[%s257 + $0x60] sm:$0xf] %v1483
        %1612 = vst [vmem:[%s257 + $0x64] sm:$0xf] %v1484
        %1613 = vst [vmem:[%s257 + $0x68] sm:$0xf] %v1485
        %1614 = vst [vmem:[%s257 + $0x6c] sm:$0xf] %v1486
        %1615 = vst [vmem:[%s257 + $0x70] sm:$0xf] %v1487
        %1616 = vst [vmem:[%s257 + $0x74] sm:$0xf] %v1488
        %1617 = vst [vmem:[%s257 + $0x78] sm:$0xf] %v1489
        %1618 = vst [vmem:[%s257 + $0x7c] sm:$0xf] %v1490
        %1619 = vst [vmem:[%s257 + $0x80] sm:$0xf] %v1491
        %1620 = vst [vmem:[%s257 + $0x84] sm:$0xf] %v1492
        %1621 = vst [vmem:[%s257 + $0x88] sm:$0xf] %v1493
        %1622 = vst [vmem:[%s257 + $0x8c] sm:$0xf] %v1494
        %1623 = vst [vmem:[%s257 + $0x90] sm:$0xf] %v1495
        %1624 = vst [vmem:[%s257 + $0x94] sm:$0xf] %v1496
        %1625 = vst [vmem:[%s257 + $0x98] sm:$0xf] %v1497
        %1626 = vst [vmem:[%s257 + $0x9c] sm:$0xf] %v1498
        %1627 = vst [vmem:[%s257 + $0xa0] sm:$0xf] %v1499
        %1628 = vst [vmem:[%s257 + $0xa4] sm:$0xf] %v1500
        %1629 = vst [vmem:[%s257 + $0xa8] sm:$0xf] %v1501
        %1630 = vst [vmem:[%s257 + $0xac] sm:$0xf] %v1502
        %1631 = vst [vmem:[%s257 + $0xb0] sm:$0xf] %v1503
        %1632 = vst [vmem:[%s257 + $0xb4] sm:$0xf] %v1504
        %1633 = vst [vmem:[%s257 + $0xb8] sm:$0xf] %v1505
        %1634 = vst [vmem:[%s257 + $0xbc] sm:$0xf] %v1506
        %1635 = vst [vmem:[%s257 + $0xc0] sm:$0xf] %v1507
        %1636 = vst [vmem:[%s257 + $0xc4] sm:$0xf] %v1508
        %1637 = vst [vmem:[%s257 + $0xc8] sm:$0xf] %v1509
        %1638 = vst [vmem:[%s257 + $0xcc] sm:$0xf] %v1510
        %1639 = vst [vmem:[%s257 + $0xd0] sm:$0xf] %v1511
        %1640 = vst [vmem:[%s257 + $0xd4] sm:$0xf] %v1512
        %1641 = vst [vmem:[%s257 + $0xd8] sm:$0xf] %v1513
        %1642 = vst [vmem:[%s257 + $0xdc] sm:$0xf] %v1514
        %1643 = vst [vmem:[%s257 + $0xe0] sm:$0xf] %v1515
        %1644 = vst [vmem:[%s257 + $0xe4] sm:$0xf] %v1516
        %1645 = vst [vmem:[%s257 + $0xe8] sm:$0xf] %v1517
        %1646 = vst [vmem:[%s257 + $0xec] sm:$0xf] %v1518
        %1647 = vst [vmem:[%s257 + $0xf0] sm:$0xf] %v1519
        %1648 = vst [vmem:[%s257 + $0xf4] sm:$0xf] %v1520
        %1649 = vst [vmem:[%s257 + $0xf8] sm:$0xf] %v1521
        %1650 = vst [vmem:[%s257 + $0xfc] sm:$0xf] %v1522
      $region40: #{_gemm_call.1} parent=31 // pred_fallthru
        _
      %s1651 = smul.u32 64, %s19
      %p1652 = scmp.lt.s32.totalorder %s1651, 255
      %s1653 = scalar_select %p1652, %s1651, 255
      %p1654 = scmp.lt.s32.totalorder %s20, 0
      %s1655 = scalar_select %p1654, %s20, 0
      %s1656 = sadd.s32 %s1655, %s1653
      %s1657 = smul.addr %s1656, 4
      %s1658 = scalar_lea.vmem %s3, %s1657
      // Predicated region
      $region41: #{_gemm_call.1} parent=31 // pred_check
        %p1659 = pneg %p135
      $region42: #{_gemm_call.1} parent=31 // pred_check_branch
        %1661 = sbr.rel (%p1659) target = $region44
      $region43: #{_gemm_call.1} parent=31 // pred_region
        %s1662 = smul.u32 64, %s19
      $region44: #{_gemm_call.1} parent=31 // pred_fallthru
        _
    $region32: #{_gemm_call.1} parent=5 // pred_fallthru
      _
    %p1663 = scmp.le.s32.totalorder 2, %s9
    // Predicated region
    $region45: #{_gemm_call.1} parent=5 // pred_check
      %p1664 = pneg %p1663
    $region46: #{_gemm_call.1} parent=5 // pred_check_branch
      %1666 = sbr.rel (%p1664) target = $region48
    $region47: #{_gemm_call.1} parent=5 // pred_region
      %s1667 = ssub.s32 %s9, 2
      // Predicated region
      $region49: #{_gemm_call.1} parent=47 // pred_check
        %p1668 = pneg %p141
      $region50: #{_gemm_call.1} parent=47 // pred_check_branch
        %1670 = sbr.rel (%p1668) target = $region52
      $region51: #{_gemm_call.1} parent=47 // pred_region
        %s1671 = smul.u32 64, %s22
        %p1672 = scmp.lt.s32.totalorder %s1671, 255
        %s1673 = scalar_select %p1672, %s1671, 255
        %p1674 = scmp.lt.s32.totalorder %s23, 0
        %s1675 = scalar_select %p1674, %s23, 0
        %s1676 = sadd.s32 %s1675, %s1673
        %s1677 = smul.addr %s1676, 4
        %s1678 = scalar_lea.vmem %s3, %s1677
      $region52: #{_gemm_call.1} parent=47 // pred_fallthru
        _
    $region48: #{_gemm_call.1} parent=5 // pred_fallthru
      _
  $region6: #{_gemm_call.1} parent=0 // loop_footer
    %s13 = sadd.s32 1, %s9
  $region7: #{_gemm_call.1} parent=0 // loop_footer_branch
    %8 = sbr.rel target = $region3
  $region8: #{_gemm_call.1} parent=0 // loop_exit
    _

</llo_original>
